<compile_context>
chip_gen: v6e
topology: v6e:2x2x1
jax: 0.10.0
libtpu: 0.0.40
codegen_flags: <defaults>
</compile_context>

<pallas_src>
from functools import partial

import jax
import jax.numpy as jnp
import numpy as np
from jax.experimental import pallas as pl
from jax.experimental.pallas import tpu as pltpu

BN_EPS = 1e-5            # cfg.BN.EPS default in pycls
COMPUTE_DTYPE = jnp.bfloat16


def _round_up(x, m):
    return (x + m - 1) // m * m


# ----------------------------------------------------------------------------
# Pallas kernel: tiled (rows, K) matmul + folded-BN affine + residual + ReLU
# ----------------------------------------------------------------------------
def fused_conv_matmul(p, w, scale, bias, residual=None, relu=False,
                      out_dtype=jnp.float32):
    """y = relu?( p @ w * scale + bias (+ residual) )

    p:        (R, K)  im2col patches (rows = N*Ho*Wo), any float dtype
    w:        (K, C)  flattened conv weight
    scale:    (C,)    gamma / sqrt(var + eps)          (f32)
    bias:     (C,)    beta - mean * scale              (f32)
    residual: (R, C)  optional skip branch
    Returns (R, C) in out_dtype.
    """
    R, K = p.shape
    C = w.shape[1]
    has_res = residual is not None

    # --- padded / tiled sizes (lane-dense, MXU-friendly) ---------------------
    Cp = _round_up(C, 128)
    TM = min(256, _round_up(R, 16))           # rows per step  (parallel axis)
    Rp = _round_up(R, TM)
    TK = min(512, _round_up(K, 128))          # contraction per step (arbitrary)
    Kp = _round_up(_round_up(K, 128), TK)

    p = jnp.pad(p.astype(COMPUTE_DTYPE), ((0, Rp - R), (0, Kp - K)))
    w = jnp.pad(w.astype(COMPUTE_DTYPE), ((0, Kp - K), (0, Cp - C)))
    sb = jnp.stack([jnp.pad(scale.astype(jnp.float32), (0, Cp - C)),
                    jnp.pad(bias.astype(jnp.float32), (0, Cp - C))])   # (2, Cp)
    if has_res:
        residual = jnp.pad(residual.astype(COMPUTE_DTYPE),
                           ((0, Rp - R), (0, Cp - C)))

    nk = Kp // TK
    grid = (Rp // TM, nk)

    def kernel(*refs):
        if has_res:
            p_ref, w_ref, sb_ref, r_ref, o_ref, acc_ref = refs
        else:
            p_ref, w_ref, sb_ref, o_ref, acc_ref = refs
            r_ref = None
        k = pl.program_id(1)

        @pl.when(k == 0)
        def _():
            acc_ref[...] = jnp.zeros_like(acc_ref)

        acc_ref[...] += jnp.dot(p_ref[...], w_ref[...],
                                preferred_element_type=jnp.float32)

        @pl.when(k == pl.num_programs(1) - 1)
        def _():
            y = acc_ref[...] * sb_ref[0:1, :] + sb_ref[1:2, :]
            if has_res:
                y = y + r_ref[...].astype(jnp.float32)
            if relu:
                y = jnp.maximum(y, 0.0)
            o_ref[...] = y.astype(o_ref.dtype)

    in_specs = [
        pl.BlockSpec((TM, TK), lambda m, k: (m, k)),
        pl.BlockSpec((TK, Cp), lambda m, k: (k, 0)),
        pl.BlockSpec((2, Cp), lambda m, k: (0, 0)),
    ]
    args = [p, w, sb]
    if has_res:
        in_specs.append(pl.BlockSpec((TM, Cp), lambda m, k: (m, 0)))
        args.append(residual)

    out_itemsize = jnp.dtype(out_dtype).itemsize
    cost = pl.CostEstimate(
        flops=2 * Rp * Kp * Cp,
        transcendentals=0,
        bytes_accessed=int(Rp * Kp * 2 + (Rp // TM) * Kp * Cp * 2
                           + Rp * Cp * (out_itemsize + (2 if has_res else 0))
                           + 2 * Cp * 4),
    )

    out = pl.pallas_call(
        kernel,
        out_shape=jax.ShapeDtypeStruct((Rp, Cp), out_dtype),
        grid=grid,
        in_specs=in_specs,
        out_specs=pl.BlockSpec((TM, Cp), lambda m, k: (m, 0)),
        scratch_shapes=[pltpu.VMEM((TM, Cp), jnp.float32)],
        compiler_params=pltpu.CompilerParams(
            dimension_semantics=("parallel", "arbitrary"),
            vmem_limit_bytes=48 * 1024 * 1024,   # headroom; safe on v7x 64 MiB
        ),
        cost_estimate=cost,
    )(*args)

    return out[:R, :C]


# ----------------------------------------------------------------------------
# JAX glue: im2col, BN folding, parameter init, block wiring
# ----------------------------------------------------------------------------
def _fold_bn(bn, eps=BN_EPS):
    gamma, beta, mean, var = bn
    scale = gamma / jnp.sqrt(var + eps)
    return scale, beta - mean * scale


def _extract_patches_3x3(x, stride):
    """im2col for a 3x3 / pad=1 conv.  x: (N,H,W,C) -> (N*Ho*Wo, 9*C)."""
    N, H, W, C = x.shape
    Ho = (H + 2 - 3) // stride + 1
    Wo = (W + 2 - 3) // stride + 1
    xp = jnp.pad(x, ((0, 0), (1, 1), (1, 1), (0, 0)))
    cols = []
    for kh in range(3):
        for kw in range(3):
            cols.append(
                xp[:, kh:kh + (Ho - 1) * stride + 1:stride,
                   kw:kw + (Wo - 1) * stride + 1:stride, :])
    patches = jnp.concatenate(cols, axis=-1)  # order matches HWIO weight flatten
    return patches.reshape(N * Ho * Wo, 9 * C), Ho, Wo


def init_res_basic_block(key, w_in, w_out, stride):
    ks = jax.random.split(key, 8)

    def conv_w(k, kh, kw, cin, cout):
        fan_in = kh * kw * cin
        return jax.random.normal(k, (kh, kw, cin, cout), jnp.float32) * (2.0 / fan_in) ** 0.5

    def bn_params(k, c):
        k1, k2, k3, k4 = jax.random.split(k, 4)
        gamma = 1.0 + 0.1 * jax.random.normal(k1, (c,), jnp.float32)
        beta = 0.1 * jax.random.normal(k2, (c,), jnp.float32)
        mean = 0.1 * jax.random.normal(k3, (c,), jnp.float32)
        var = 0.5 + jnp.abs(jax.random.normal(k4, (c,), jnp.float32))
        return (gamma, beta, mean, var)

    params = {
        'wa': conv_w(ks[0], 3, 3, w_in, w_out),
        'bn_a': bn_params(ks[1], w_out),
        'wb': conv_w(ks[2], 3, 3, w_out, w_out),
        'bn_b': bn_params(ks[3], w_out),
    }
    if w_in != w_out or stride != 1:
        params['wp'] = conv_w(ks[4], 1, 1, w_in, w_out)
        params['bn_p'] = bn_params(ks[5], w_out)
    return params


@partial(jax.jit, static_argnums=(2,))
def res_basic_block(x, params, stride):
    """Forward of ResBasicBlock.  x: (N, H, W, Cin) NHWC -> (N, Ho, Wo, Cout)."""
    N, H, W, Cin = x.shape
    Cout = params['wa'].shape[-1]
    proj_block = 'wp' in params

    scale_a, bias_a = _fold_bn(params['bn_a'])
    scale_b, bias_b = _fold_bn(params['bn_b'])

    # bf16 activations: halves im2col / intermediate HBM traffic, bf16 MXU.
    xb = x.astype(COMPUTE_DTYPE)

    # f(x) branch: conv_a (3x3/stride) + BN + ReLU  -> bf16 intermediate
    pa, Ho, Wo = _extract_patches_3x3(xb, stride)
    fa = fused_conv_matmul(pa, params['wa'].reshape(9 * Cin, Cout),
                           scale_a, bias_a, relu=True, out_dtype=COMPUTE_DTYPE)
    R = N * Ho * Wo

    # skip branch
    if proj_block:
        scale_p, bias_p = _fold_bn(params['bn_p'])
        xs = xb[:, ::stride, ::stride, :].reshape(R, Cin)  # 1x1/stride conv == subsample + matmul
        res = fused_conv_matmul(xs, params['wp'].reshape(Cin, Cout),
                                scale_p, bias_p, relu=False,
                                out_dtype=COMPUTE_DTYPE)
    else:
        res = xb.reshape(R, Cin)   # Cin == Cout, stride == 1

    # conv_b (3x3/1) + BN, fused residual add + final ReLU in the same kernel
    pb, _, _ = _extract_patches_3x3(fa.reshape(N, Ho, Wo, Cout), 1)
    out = fused_conv_matmul(pb, params['wb'].reshape(9 * Cout, Cout),
                            scale_b, bias_b, residual=res, relu=True,
                            out_dtype=jnp.float32)
    return out.reshape(N, Ho, Wo, Cout)


# ----------------------------------------------------------------------------
# Pure-JAX reference (lax.conv) for correctness checking
# ----------------------------------------------------------------------------
def _ref_conv(x, w, stride, padding):
    return jax.lax.conv_general_dilated(
        x, w, (stride, stride), padding,
        dimension_numbers=('NHWC', 'HWIO', 'NHWC'),
        precision=jax.lax.Precision.HIGHEST)


def ref_res_basic_block(x, params, stride):
    def bn(y, p):
        gamma, beta, mean, var = p
        return (y - mean) / jnp.sqrt(var + BN_EPS) * gamma + beta

    a = jax.nn.relu(bn(_ref_conv(x, params['wa'], stride, ((1, 1), (1, 1))), params['bn_a']))
    b = bn(_ref_conv(a, params['wb'], 1, ((1, 1), (1, 1))), params['bn_b'])
    if 'wp' in params:
        skip = bn(_ref_conv(x, params['wp'], stride, ((0, 0), (0, 0))), params['bn_p'])
    else:
        skip = x
    return jax.nn.relu(skip + b)


# ----------------------------------------------------------------------------
if __name__ == "__main__":
    key = jax.random.PRNGKey(0)
    k_x, k_x2, k_p1, k_p2 = jax.random.split(key, 4)

    # PyTorch-convention NCHW input (2, 4, 16, 16), transposed to NHWC.
    x_nchw = jax.random.normal(k_x, (2, 4, 16, 16), jnp.float32)
    x = jnp.transpose(x_nchw, (0, 2, 3, 1))

    # Tolerances are loosened vs. the f32-HIGHEST version because the MXU now
    # runs bf16 inputs with f32 accumulation (standard inference numerics).
    TOL = 3e-2

    # Case 1: projection block (w_in=4 -> w_out=8, stride=2).
    p1 = init_res_basic_block(k_p1, 4, 8, 2)
    out1 = jax.block_until_ready(res_basic_block(x, p1, 2))
    ref1 = ref_res_basic_block(x, p1, 2)
    np.testing.assert_allclose(np.asarray(out1), np.asarray(ref1), rtol=TOL, atol=TOL)

    # Case 2: identity-skip block (w_in=w_out=8, stride=1).
    x2 = jnp.transpose(jax.random.normal(k_x2, (2, 8, 8, 8), jnp.float32), (0, 2, 3, 1))
    p2 = init_res_basic_block(k_p2, 8, 8, 1)
    out2 = jax.block_until_ready(res_basic_block(x2, p2, 1))
    ref2 = ref_res_basic_block(x2, p2, 1)
    np.testing.assert_allclose(np.asarray(out2), np.asarray(ref2), rtol=TOL, atol=TOL)

    print("KERNEL_OK")
</pallas_src>

<mosaic_0001>
module attributes {stable_mosaic.version = 11 : i64} {
  func.func @kernel(%arg0: i32, %arg1: i32, %arg2: memref<128x128xbf16, #tpu.memory_space<vmem>>, %arg3: memref<128x128xbf16, #tpu.memory_space<vmem>>, %arg4: memref<2x128xf32, #tpu.memory_space<vmem>>, %arg5: memref<128x128xbf16, #tpu.memory_space<vmem>>, %arg6: memref<128x128xf32, #tpu.memory_space<vmem>>) attributes {dimension_semantics = [#tpu.dimension_semantics<parallel>, #tpu.dimension_semantics<arbitrary>], iteration_bounds = array<i64: 1, 1>, scalar_prefetch = 0 : i64, scratch_operands = 1 : i64, tpu.core_type = #tpu.core_type<tc>, window_params = [{transform_indices = @transform_0, window_bounds = array<i64: 128, 128>}, {transform_indices = @transform_1, window_bounds = array<i64: 128, 128>}, {pipeline_mode = #tpu.pipeline_mode<synchronous>, transform_indices = @transform_2, window_bounds = array<i64: 2, 128>}, {transform_indices = @transform_3, window_bounds = array<i64: 128, 128>}]} {
    %c0_i32 = arith.constant 0 : i32
    %0 = arith.cmpi eq, %arg1, %c0_i32 : i32
    %1 = arith.extui %0 : i1 to i32
    %c0_i32_0 = arith.constant 0 : i32
    %2 = arith.cmpi ne, %1, %c0_i32_0 : i32
    scf.if %2 {
      %cst_10 = arith.constant 0.000000e+00 : f32
      %12 = vector.broadcast %cst_10 : f32 to vector<128x128xf32>
      %c0_11 = arith.constant 0 : index
      %c0_12 = arith.constant 0 : index
      %13 = vector.load %arg6[%c0_11, %c0_12] : memref<128x128xf32, #tpu.memory_space<vmem>>, vector<128x128xf32>
      tpu.vector_store %arg6[%c0_11, %c0_12], %12 {strides = array<i32>} : memref<128x128xf32, #tpu.memory_space<vmem>>, vector<128x128xf32>,
    } else {
    }
    %c0 = arith.constant 0 : index
    %c0_1 = arith.constant 0 : index
    %3 = vector.load %arg6[%c0, %c0_1] : memref<128x128xf32, #tpu.memory_space<vmem>>, vector<128x128xf32>
    %c0_2 = arith.constant 0 : index
    %c0_3 = arith.constant 0 : index
    %4 = vector.load %arg2[%c0_2, %c0_3] : memref<128x128xbf16, #tpu.memory_space<vmem>>, vector<128x128xbf16>
    %c0_4 = arith.constant 0 : index
    %c0_5 = arith.constant 0 : index
    %5 = vector.load %arg3[%c0_4, %c0_5] : memref<128x128xbf16, #tpu.memory_space<vmem>>, vector<128x128xbf16>
    %cst = arith.constant dense<0.000000e+00> : vector<128x128xf32>
    %6 = tpu.matmul %4, %5, %cst {dimension_numbers = #tpu.dot_dimension_numbers<[1], [0], [0], [1], [0, 0, 1, 1], [], []>} : vector<128x128xbf16>, vector<128x128xbf16>, vector<128x128xf32> -> vector<128x128xf32>
    %7 = arith.addf %3, %6 : vector<128x128xf32>
    %c0_6 = arith.constant 0 : index
    %c0_7 = arith.constant 0 : index
    %8 = vector.load %arg6[%c0_6, %c0_7] : memref<128x128xf32, #tpu.memory_space<vmem>>, vector<128x128xf32>
    tpu.vector_store %arg6[%c0_6, %c0_7], %7 {strides = array<i32>} : memref<128x128xf32, #tpu.memory_space<vmem>>, vector<128x128xf32>,
    %c0_i32_8 = arith.constant 0 : i32
    %9 = arith.cmpi eq, %arg1, %c0_i32_8 : i32
    %10 = arith.extui %9 : i1 to i32
    %c0_i32_9 = arith.constant 0 : i32
    %11 = arith.cmpi ne, %10, %c0_i32_9 : i32
    scf.if %11 {
      %c0_10 = arith.constant 0 : index
      %c0_11 = arith.constant 0 : index
      %12 = vector.load %arg6[%c0_10, %c0_11] : memref<128x128xf32, #tpu.memory_space<vmem>>, vector<128x128xf32>
      %c0_12 = arith.constant 0 : index
      %c0_13 = arith.constant 0 : index
      %13 = vector.load %arg4[%c0_12, %c0_13] : memref<2x128xf32, #tpu.memory_space<vmem>>, vector<1x128xf32>
      %14 = vector.broadcast %13 : vector<1x128xf32> to vector<128x128xf32>
      %15 = arith.mulf %12, %14 : vector<128x128xf32>
      %c1 = arith.constant 1 : index
      %c0_14 = arith.constant 0 : index
      %16 = vector.load %arg4[%c1, %c0_14] : memref<2x128xf32, #tpu.memory_space<vmem>>, vector<1x128xf32>
      %17 = vector.broadcast %16 : vector<1x128xf32> to vector<128x128xf32>
      %18 = arith.addf %15, %17 : vector<128x128xf32>
      %19 = arith.truncf %18 : vector<128x128xf32> to vector<128x128xbf16>
      %c0_15 = arith.constant 0 : index
      %c0_16 = arith.constant 0 : index
      %20 = vector.load %arg5[%c0_15, %c0_16] : memref<128x128xbf16, #tpu.memory_space<vmem>>, vector<128x128xbf16>
      tpu.vector_store %arg5[%c0_15, %c0_16], %19 {strides = array<i32>} : memref<128x128xbf16, #tpu.memory_space<vmem>>, vector<128x128xbf16>,
    } else {
    }
    return
  }
  func.func @transform_0(%arg0: i32, %arg1: i32) -> (i32, i32) {
    %c0_i32 = arith.constant 0 : i32
    return %arg0, %arg1 : i32, i32
  }
  func.func @transform_1(%arg0: i32, %arg1: i32) -> (i32, i32) {
    %c0_i32 = arith.constant 0 : i32
    %c0_i32_0 = arith.constant 0 : i32
    return %arg1, %c0_i32 : i32, i32
  }
  func.func @transform_2(%arg0: i32, %arg1: i32) -> (i32, i32) {
    %c0_i32 = arith.constant 0 : i32
    %c0_i32_0 = arith.constant 0 : i32
    %c0_i32_1 = arith.constant 0 : i32
    return %c0_i32, %c0_i32_0 : i32, i32
  }
  func.func @transform_3(%arg0: i32, %arg1: i32) -> (i32, i32) {
    %c0_i32 = arith.constant 0 : i32
    %c0_i32_0 = arith.constant 0 : i32
    return %arg0, %c0_i32 : i32, i32
  }
}

module attributes {stable_mosaic.version = 11 : i64} {
  func.func @kernel(%arg0: i32, %arg1: i32, %arg2: memref<128x128xbf16, #tpu.memory_space<vmem>>, %arg3: memref<128x128xbf16, #tpu.memory_space<vmem>>, %arg4: memref<2x128xf32, #tpu.memory_space<vmem>>, %arg5: memref<128x128xbf16, #tpu.memory_space<vmem>>, %arg6: memref<128x128xf32, #tpu.memory_space<vmem>>) attributes {dimension_semantics = [#tpu.dimension_semantics<parallel>, #tpu.dimension_semantics<arbitrary>], iteration_bounds = array<i64: 1, 1>, scalar_prefetch = 0 : i64, scratch_operands = 1 : i64, tpu.core_type = #tpu.core_type<tc>, window_params = [{transform_indices = @transform_0, window_bounds = array<i64: 128, 128>}, {transform_indices = @transform_1, window_bounds = array<i64: 128, 128>}, {pipeline_mode = #tpu.pipeline_mode<synchronous>, transform_indices = @transform_2, window_bounds = array<i64: 2, 128>}, {transform_indices = @transform_3, window_bounds = array<i64: 128, 128>}]} {
    %c0_i32 = arith.constant 0 : i32
    %0 = arith.cmpi eq, %arg1, %c0_i32 : i32
    %1 = arith.extui %0 : i1 to i32
    %c0_i32_0 = arith.constant 0 : i32
    %2 = arith.cmpi ne, %1, %c0_i32_0 : i32
    scf.if %2 {
      %cst_10 = arith.constant 0.000000e+00 : f32
      %12 = vector.broadcast %cst_10 : f32 to vector<128x128xf32>
      %c0_11 = arith.constant 0 : index
      %c0_12 = arith.constant 0 : index
      %13 = vector.load %arg6[%c0_11, %c0_12] : memref<128x128xf32, #tpu.memory_space<vmem>>, vector<128x128xf32>
      tpu.vector_store %arg6[%c0_11, %c0_12], %12 {strides = array<i32>} : memref<128x128xf32, #tpu.memory_space<vmem>>, vector<128x128xf32>,
    } else {
    }
    %c0 = arith.constant 0 : index
    %c0_1 = arith.constant 0 : index
    %3 = vector.load %arg6[%c0, %c0_1] : memref<128x128xf32, #tpu.memory_space<vmem>>, vector<128x128xf32>
    %c0_2 = arith.constant 0 : index
    %c0_3 = arith.constant 0 : index
    %4 = vector.load %arg2[%c0_2, %c0_3] : memref<128x128xbf16, #tpu.memory_space<vmem>>, vector<128x128xbf16>
    %c0_4 = arith.constant 0 : index
    %c0_5 = arith.constant 0 : index
    %5 = vector.load %arg3[%c0_4, %c0_5] : memref<128x128xbf16, #tpu.memory_space<vmem>>, vector<128x128xbf16>
    %cst = arith.constant dense<0.000000e+00> : vector<128x128xf32>
    %6 = tpu.matmul %4, %5, %cst {dimension_numbers = #tpu.dot_dimension_numbers<[1], [0], [0], [1], [0, 0, 1, 1], [], []>} : vector<128x128xbf16>, vector<128x128xbf16>, vector<128x128xf32> -> vector<128x128xf32>
    %7 = arith.addf %3, %6 : vector<128x128xf32>
    %c0_6 = arith.constant 0 : index
    %c0_7 = arith.constant 0 : index
    %8 = vector.load %arg6[%c0_6, %c0_7] : memref<128x128xf32, #tpu.memory_space<vmem>>, vector<128x128xf32>
    tpu.vector_store %arg6[%c0_6, %c0_7], %7 {strides = array<i32>} : memref<128x128xf32, #tpu.memory_space<vmem>>, vector<128x128xf32>,
    %c0_i32_8 = arith.constant 0 : i32
    %9 = arith.cmpi eq, %arg1, %c0_i32_8 : i32
    %10 = arith.extui %9 : i1 to i32
    %c0_i32_9 = arith.constant 0 : i32
    %11 = arith.cmpi ne, %10, %c0_i32_9 : i32
    scf.if %11 {
      %c0_10 = arith.constant 0 : index
      %c0_11 = arith.constant 0 : index
      %12 = vector.load %arg6[%c0_10, %c0_11] : memref<128x128xf32, #tpu.memory_space<vmem>>, vector<128x128xf32>
      %c0_12 = arith.constant 0 : index
      %c0_13 = arith.constant 0 : index
      %13 = vector.load %arg4[%c0_12, %c0_13] : memref<2x128xf32, #tpu.memory_space<vmem>>, vector<1x128xf32>
      %14 = vector.broadcast %13 : vector<1x128xf32> to vector<128x128xf32>
      %15 = arith.mulf %12, %14 : vector<128x128xf32>
      %c1 = arith.constant 1 : index
      %c0_14 = arith.constant 0 : index
      %16 = vector.load %arg4[%c1, %c0_14] : memref<2x128xf32, #tpu.memory_space<vmem>>, vector<1x128xf32>
      %17 = vector.broadcast %16 : vector<1x128xf32> to vector<128x128xf32>
      %18 = arith.addf %15, %17 : vector<128x128xf32>
      %cst_15 = arith.constant 0.000000e+00 : f32
      %19 = vector.broadcast %cst_15 : f32 to vector<128x128xf32>
      %20 = arith.maximumf %18, %19 : vector<128x128xf32>
      %21 = arith.truncf %20 : vector<128x128xf32> to vector<128x128xbf16>
      %c0_16 = arith.constant 0 : index
      %c0_17 = arith.constant 0 : index
      %22 = vector.load %arg5[%c0_16, %c0_17] : memref<128x128xbf16, #tpu.memory_space<vmem>>, vector<128x128xbf16>
      tpu.vector_store %arg5[%c0_16, %c0_17], %21 {strides = array<i32>} : memref<128x128xbf16, #tpu.memory_space<vmem>>, vector<128x128xbf16>,
    } else {
    }
    return
  }
  func.func @transform_0(%arg0: i32, %arg1: i32) -> (i32, i32) {
    %c0_i32 = arith.constant 0 : i32
    return %arg0, %arg1 : i32, i32
  }
  func.func @transform_1(%arg0: i32, %arg1: i32) -> (i32, i32) {
    %c0_i32 = arith.constant 0 : i32
    %c0_i32_0 = arith.constant 0 : i32
    return %arg1, %c0_i32 : i32, i32
  }
  func.func @transform_2(%arg0: i32, %arg1: i32) -> (i32, i32) {
    %c0_i32 = arith.constant 0 : i32
    %c0_i32_0 = arith.constant 0 : i32
    %c0_i32_1 = arith.constant 0 : i32
    return %c0_i32, %c0_i32_0 : i32, i32
  }
  func.func @transform_3(%arg0: i32, %arg1: i32) -> (i32, i32) {
    %c0_i32 = arith.constant 0 : i32
    %c0_i32_0 = arith.constant 0 : i32
    return %arg0, %c0_i32 : i32, i32
  }
}

module attributes {stable_mosaic.version = 11 : i64} {
  func.func @kernel(%arg0: i32, %arg1: i32, %arg2: memref<128x128xbf16, #tpu.memory_space<vmem>>, %arg3: memref<128x128xbf16, #tpu.memory_space<vmem>>, %arg4: memref<2x128xf32, #tpu.memory_space<vmem>>, %arg5: memref<128x128xbf16, #tpu.memory_space<vmem>>, %arg6: memref<128x128xf32, #tpu.memory_space<vmem>>, %arg7: memref<128x128xf32, #tpu.memory_space<vmem>>) attributes {dimension_semantics = [#tpu.dimension_semantics<parallel>, #tpu.dimension_semantics<arbitrary>], iteration_bounds = array<i64: 1, 1>, scalar_prefetch = 0 : i64, scratch_operands = 1 : i64, tpu.core_type = #tpu.core_type<tc>, window_params = [{transform_indices = @transform_0, window_bounds = array<i64: 128, 128>}, {transform_indices = @transform_1, window_bounds = array<i64: 128, 128>}, {pipeline_mode = #tpu.pipeline_mode<synchronous>, transform_indices = @transform_2, window_bounds = array<i64: 2, 128>}, {transform_indices = @transform_3, window_bounds = array<i64: 128, 128>}, {transform_indices = @transform_4, window_bounds = array<i64: 128, 128>}]} {
    %c0_i32 = arith.constant 0 : i32
    %0 = arith.cmpi eq, %arg1, %c0_i32 : i32
    %1 = arith.extui %0 : i1 to i32
    %c0_i32_0 = arith.constant 0 : i32
    %2 = arith.cmpi ne, %1, %c0_i32_0 : i32
    scf.if %2 {
      %cst_10 = arith.constant 0.000000e+00 : f32
      %12 = vector.broadcast %cst_10 : f32 to vector<128x128xf32>
      %c0_11 = arith.constant 0 : index
      %c0_12 = arith.constant 0 : index
      %13 = vector.load %arg7[%c0_11, %c0_12] : memref<128x128xf32, #tpu.memory_space<vmem>>, vector<128x128xf32>
      tpu.vector_store %arg7[%c0_11, %c0_12], %12 {strides = array<i32>} : memref<128x128xf32, #tpu.memory_space<vmem>>, vector<128x128xf32>,
    } else {
    }
    %c0 = arith.constant 0 : index
    %c0_1 = arith.constant 0 : index
    %3 = vector.load %arg7[%c0, %c0_1] : memref<128x128xf32, #tpu.memory_space<vmem>>, vector<128x128xf32>
    %c0_2 = arith.constant 0 : index
    %c0_3 = arith.constant 0 : index
    %4 = vector.load %arg2[%c0_2, %c0_3] : memref<128x128xbf16, #tpu.memory_space<vmem>>, vector<128x128xbf16>
    %c0_4 = arith.constant 0 : index
    %c0_5 = arith.constant 0 : index
    %5 = vector.load %arg3[%c0_4, %c0_5] : memref<128x128xbf16, #tpu.memory_space<vmem>>, vector<128x128xbf16>
    %cst = arith.constant dense<0.000000e+00> : vector<128x128xf32>
    %6 = tpu.matmul %4, %5, %cst {dimension_numbers = #tpu.dot_dimension_numbers<[1], [0], [0], [1], [0, 0, 1, 1], [], []>} : vector<128x128xbf16>, vector<128x128xbf16>, vector<128x128xf32> -> vector<128x128xf32>
    %7 = arith.addf %3, %6 : vector<128x128xf32>
    %c0_6 = arith.constant 0 : index
    %c0_7 = arith.constant 0 : index
    %8 = vector.load %arg7[%c0_6, %c0_7] : memref<128x128xf32, #tpu.memory_space<vmem>>, vector<128x128xf32>
    tpu.vector_store %arg7[%c0_6, %c0_7], %7 {strides = array<i32>} : memref<128x128xf32, #tpu.memory_space<vmem>>, vector<128x128xf32>,
    %c0_i32_8 = arith.constant 0 : i32
    %9 = arith.cmpi eq, %arg1, %c0_i32_8 : i32
    %10 = arith.extui %9 : i1 to i32
    %c0_i32_9 = arith.constant 0 : i32
    %11 = arith.cmpi ne, %10, %c0_i32_9 : i32
    scf.if %11 {
      %c0_10 = arith.constant 0 : index
      %c0_11 = arith.constant 0 : index
      %12 = vector.load %arg7[%c0_10, %c0_11] : memref<128x128xf32, #tpu.memory_space<vmem>>, vector<128x128xf32>
      %c0_12 = arith.constant 0 : index
      %c0_13 = arith.constant 0 : index
      %13 = vector.load %arg4[%c0_12, %c0_13] : memref<2x128xf32, #tpu.memory_space<vmem>>, vector<1x128xf32>
      %14 = vector.broadcast %13 : vector<1x128xf32> to vector<128x128xf32>
      %15 = arith.mulf %12, %14 : vector<128x128xf32>
      %c1 = arith.constant 1 : index
      %c0_14 = arith.constant 0 : index
      %16 = vector.load %arg4[%c1, %c0_14] : memref<2x128xf32, #tpu.memory_space<vmem>>, vector<1x128xf32>
      %17 = vector.broadcast %16 : vector<1x128xf32> to vector<128x128xf32>
      %18 = arith.addf %15, %17 : vector<128x128xf32>
      %c0_15 = arith.constant 0 : index
      %c0_16 = arith.constant 0 : index
      %19 = vector.load %arg5[%c0_15, %c0_16] : memref<128x128xbf16, #tpu.memory_space<vmem>>, vector<128x128xbf16>
      %20 = arith.extf %19 : vector<128x128xbf16> to vector<128x128xf32>
      %21 = arith.addf %18, %20 : vector<128x128xf32>
      %cst_17 = arith.constant 0.000000e+00 : f32
      %22 = vector.broadcast %cst_17 : f32 to vector<128x128xf32>
      %23 = arith.maximumf %21, %22 : vector<128x128xf32>
      %c0_18 = arith.constant 0 : index
      %c0_19 = arith.constant 0 : index
      %24 = vector.load %arg6[%c0_18, %c0_19] : memref<128x128xf32, #tpu.memory_space<vmem>>, vector<128x128xf32>
      tpu.vector_store %arg6[%c0_18, %c0_19], %23 {strides = array<i32>} : memref<128x128xf32, #tpu.memory_space<vmem>>, vector<128x128xf32>,
    } else {
    }
    return
  }
  func.func @transform_0(%arg0: i32, %arg1: i32) -> (i32, i32) {
    %c0_i32 = arith.constant 0 : i32
    return %arg0, %arg1 : i32, i32
  }
  func.func @transform_1(%arg0: i32, %arg1: i32) -> (i32, i32) {
    %c0_i32 = arith.constant 0 : i32
    %c0_i32_0 = arith.constant 0 : i32
    return %arg1, %c0_i32 : i32, i32
  }
  func.func @transform_2(%arg0: i32, %arg1: i32) -> (i32, i32) {
    %c0_i32 = arith.constant 0 : i32
    %c0_i32_0 = arith.constant 0 : i32
    %c0_i32_1 = arith.constant 0 : i32
    return %c0_i32, %c0_i32_0 : i32, i32
  }
  func.func @transform_3(%arg0: i32, %arg1: i32) -> (i32, i32) {
    %c0_i32 = arith.constant 0 : i32
    %c0_i32_0 = arith.constant 0 : i32
    return %arg0, %c0_i32 : i32, i32
  }
  func.func @transform_4(%arg0: i32, %arg1: i32) -> (i32, i32) {
    %c0_i32 = arith.constant 0 : i32
    %c0_i32_0 = arith.constant 0 : i32
    return %arg0, %c0_i32 : i32, i32
  }
}

</mosaic_0001>

<llo_original>
// kernel: res_basic_block.4
$region0: #{res_basic_block.4}
  #allocation0 [shape = 'u32[]', space=smem, size = 0x4, offset = 0x4, fixed_abs, tag = 'smem constant byte address 0x4 - core index']
  #allocation1 [shape = 'u32[144,128]{1,0:T(1,128)}', space=vmem, size = 0x12000, scoped, tag = 'internal scratch']
  #allocation2 [shape = 'f32[128,128]{1,0:T(8,128)}', space=vmem, size = 0x10000, scoped, tag = 'scratch operand']
  %s0 = inlined_call_operand.vmem [shape: bf16[128,128], index: 0, kind: input, shape index: {}]
  %s1 = inlined_call_operand.vmem [shape: bf16[128,128], index: 1, kind: input, shape index: {}]
  %s2 = inlined_call_operand.vmem [shape: f32[2,128], index: 2, kind: input, shape index: {}]
  %s3 = inlined_call_operand.vmem [shape: bf16[128,128], index: 3, kind: output, shape index: {}]
  %s4 = sld [smem:[#allocation0]]
  $region30: #{res_basic_block.4} parent=0
    _
  %s6 = ssub.s32 1, %s4
  %s7 = scalar_select 0, %s6, %s4
  // Predicated region
  $region2: #{res_basic_block.4} parent=0 // pred_check
    _
  $region3: #{res_basic_block.4} parent=0 // pred_check_branch
    %9 = sbr.rel (0) target = $region5
  $region4: #{res_basic_block.4} parent=0 // pred_region
    _
  $region5: #{res_basic_block.4} parent=0 // pred_fallthru
    _
  // Predicated region
  $region6: #{res_basic_block.4} parent=0 // pred_check
    _
  $region7: #{res_basic_block.4} parent=0 // pred_check_branch
    %11 = sbr.rel (0) target = $region9
  $region8: #{res_basic_block.4} parent=0 // pred_region
    _
  $region9: #{res_basic_block.4} parent=0 // pred_fallthru
    _
  // Predicated region
  $region10: #{res_basic_block.4} parent=0 // pred_check
    _
  $region11: #{res_basic_block.4} parent=0 // pred_check_branch
    %13 = sbr.rel (0) target = $region13
  $region12: #{res_basic_block.4} parent=0 // pred_region
    _
  $region13: #{res_basic_block.4} parent=0 // pred_fallthru
    _
  %p15 = scmp.eq.s32.totalorder 0, 0
  // Predicated region
  $region14: #{res_basic_block.4} parent=0 // pred_check
    %p16 = pneg %p15
  $region15: #{res_basic_block.4} parent=0 // pred_check_branch
    %18 = sbr.rel (%p16) target = $region17
  $region16: #{res_basic_block.4} parent=0 // pred_region
    %19 = vst [vmem:[#allocation2] sm:$0xff] 0.0
    %20 = vst [vmem:[#allocation2 + $0x8] sm:$0xff] 0.0
    %21 = vst [vmem:[#allocation2 + $0x10] sm:$0xff] 0.0
    %22 = vst [vmem:[#allocation2 + $0x18] sm:$0xff] 0.0
    %23 = vst [vmem:[#allocation2 + $0x20] sm:$0xff] 0.0
    %24 = vst [vmem:[#allocation2 + $0x28] sm:$0xff] 0.0
    %25 = vst [vmem:[#allocation2 + $0x30] sm:$0xff] 0.0
    %26 = vst [vmem:[#allocation2 + $0x38] sm:$0xff] 0.0
    %27 = vst [vmem:[#allocation2 + $0x40] sm:$0xff] 0.0
    %28 = vst [vmem:[#allocation2 + $0x48] sm:$0xff] 0.0
    %29 = vst [vmem:[#allocation2 + $0x50] sm:$0xff] 0.0
    %30 = vst [vmem:[#allocation2 + $0x58] sm:$0xff] 0.0
    %31 = vst [vmem:[#allocation2 + $0x60] sm:$0xff] 0.0
    %32 = vst [vmem:[#allocation2 + $0x68] sm:$0xff] 0.0
    %33 = vst [vmem:[#allocation2 + $0x70] sm:$0xff] 0.0
    %34 = vst [vmem:[#allocation2 + $0x78] sm:$0xff] 0.0
  $region17: #{res_basic_block.4} parent=0 // pred_fallthru
    _
  %v35 = vld [vmem:[#allocation2] sm:$0xff]
  %v36 = vld [vmem:[#allocation2 + $0x8] sm:$0xff]
  %v37 = vld [vmem:[#allocation2 + $0x10] sm:$0xff]
  %v38 = vld [vmem:[#allocation2 + $0x18] sm:$0xff]
  %v39 = vld [vmem:[#allocation2 + $0x20] sm:$0xff]
  %v40 = vld [vmem:[#allocation2 + $0x28] sm:$0xff]
  %v41 = vld [vmem:[#allocation2 + $0x30] sm:$0xff]
  %v42 = vld [vmem:[#allocation2 + $0x38] sm:$0xff]
  %v43 = vld [vmem:[#allocation2 + $0x40] sm:$0xff]
  %v44 = vld [vmem:[#allocation2 + $0x48] sm:$0xff]
  %v45 = vld [vmem:[#allocation2 + $0x50] sm:$0xff]
  %v46 = vld [vmem:[#allocation2 + $0x58] sm:$0xff]
  %v47 = vld [vmem:[#allocation2 + $0x60] sm:$0xff]
  %v48 = vld [vmem:[#allocation2 + $0x68] sm:$0xff]
  %v49 = vld [vmem:[#allocation2 + $0x70] sm:$0xff]
  %v50 = vld [vmem:[#allocation2 + $0x78] sm:$0xff]
  %v51 = vld [vmem:[%s0] sm:$0xf]
  %v52 = vld [vmem:[%s0 + $0x4] sm:$0xf]
  %v53 = vld [vmem:[%s0 + $0x8] sm:$0xf]
  %v54 = vld [vmem:[%s0 + $0xc] sm:$0xf]
  %v55 = vld [vmem:[%s0 + $0x10] sm:$0xf]
  %v56 = vld [vmem:[%s0 + $0x14] sm:$0xf]
  %v57 = vld [vmem:[%s0 + $0x18] sm:$0xf]
  %v58 = vld [vmem:[%s0 + $0x1c] sm:$0xf]
  %v59 = vld [vmem:[%s0 + $0x20] sm:$0xf]
  %v60 = vld [vmem:[%s0 + $0x24] sm:$0xf]
  %v61 = vld [vmem:[%s0 + $0x28] sm:$0xf]
  %v62 = vld [vmem:[%s0 + $0x2c] sm:$0xf]
  %v63 = vld [vmem:[%s0 + $0x30] sm:$0xf]
  %v64 = vld [vmem:[%s0 + $0x34] sm:$0xf]
  %v65 = vld [vmem:[%s0 + $0x38] sm:$0xf]
  %v66 = vld [vmem:[%s0 + $0x3c] sm:$0xf]
  %v67 = vld [vmem:[%s1] sm:$0xf]
  %v68 = vld [vmem:[%s1 + $0x4] sm:$0xf]
  %v69 = vld [vmem:[%s1 + $0x8] sm:$0xf]
  %v70 = vld [vmem:[%s1 + $0xc] sm:$0xf]
  %v71 = vld [vmem:[%s1 + $0x10] sm:$0xf]
  %v72 = vld [vmem:[%s1 + $0x14] sm:$0xf]
  %v73 = vld [vmem:[%s1 + $0x18] sm:$0xf]
  %v74 = vld [vmem:[%s1 + $0x1c] sm:$0xf]
  %v75 = vld [vmem:[%s1 + $0x20] sm:$0xf]
  %v76 = vld [vmem:[%s1 + $0x24] sm:$0xf]
  %v77 = vld [vmem:[%s1 + $0x28] sm:$0xf]
  %v78 = vld [vmem:[%s1 + $0x2c] sm:$0xf]
  %v79 = vld [vmem:[%s1 + $0x30] sm:$0xf]
  %v80 = vld [vmem:[%s1 + $0x34] sm:$0xf]
  %v81 = vld [vmem:[%s1 + $0x38] sm:$0xf]
  %v82 = vld [vmem:[%s1 + $0x3c] sm:$0xf]
  %v99 = vunpack.c.l.b16 %v51
  %v100 = vunpack.c.l.b16 %v52
  %v101 = vunpack.c.l.b16 %v53
  %v102 = vunpack.c.l.b16 %v54
  %v103 = vunpack.c.l.b16 %v55
  %v104 = vunpack.c.l.b16 %v56
  %v105 = vunpack.c.l.b16 %v57
  %v106 = vunpack.c.l.b16 %v58
  %v107 = vunpack.c.l.b16 %v59
  %v108 = vunpack.c.l.b16 %v60
  %v109 = vunpack.c.l.b16 %v61
  %v110 = vunpack.c.l.b16 %v62
  %v111 = vunpack.c.l.b16 %v63
  %v112 = vunpack.c.l.b16 %v64
  %v113 = vunpack.c.l.b16 %v65
  %v114 = vunpack.c.l.b16 %v66
  %v115 = vpack.c.b16 %v100, %v99
  %v116 = vpack.c.b16 %v102, %v101
  %v117 = vpack.c.b16 %v104, %v103
  %v118 = vpack.c.b16 %v106, %v105
  %v119 = vpack.c.b16 %v108, %v107
  %v120 = vpack.c.b16 %v110, %v109
  %v121 = vpack.c.b16 %v112, %v111
  %v122 = vpack.c.b16 %v114, %v113
  %v147 = vunpack.c.l.b16 %v67
  %v148 = vunpack.c.l.b16 %v68
  %v149 = vunpack.c.l.b16 %v69
  %v150 = vunpack.c.l.b16 %v70
  %v151 = vunpack.c.l.b16 %v71
  %v152 = vunpack.c.l.b16 %v72
  %v153 = vunpack.c.l.b16 %v73
  %v154 = vunpack.c.l.b16 %v74
  %v155 = vunpack.c.l.b16 %v75
  %v156 = vunpack.c.l.b16 %v76
  %v157 = vunpack.c.l.b16 %v77
  %v158 = vunpack.c.l.b16 %v78
  %v159 = vunpack.c.l.b16 %v79
  %v160 = vunpack.c.l.b16 %v80
  %v161 = vunpack.c.l.b16 %v81
  %v162 = vunpack.c.l.b16 %v82
  %v163 = vpack.c.b16 %v148, %v147
  %v164 = vpack.c.b16 %v150, %v149
  %v165 = vpack.c.b16 %v152, %v151
  %v166 = vpack.c.b16 %v154, %v153
  %v167 = vpack.c.b16 %v156, %v155
  %v168 = vpack.c.b16 %v158, %v157
  %v169 = vpack.c.b16 %v160, %v159
  %v170 = vpack.c.b16 %v162, %v161
  %179 = vmatprep.subr.bf16.mxu0 0
  %180 = vmatpush1.bf16.msra.mxu0 %v170
  %181 = vmatprep.subr.bf16.mxu0 0
  %182 = vmatpush1.bf16.msra.mxu0 %v169
  %183 = vmatprep.subr.bf16.mxu0 0
  %184 = vmatpush1.bf16.msra.mxu0 %v168
  %185 = vmatprep.subr.bf16.mxu0 0
  %186 = vmatpush1.bf16.msra.mxu0 %v167
  %187 = vmatprep.subr.bf16.mxu0 0
  %188 = vmatpush1.bf16.msra.mxu0 %v166
  %189 = vmatprep.subr.bf16.mxu0 0
  %190 = vmatpush1.bf16.msra.mxu0 %v165
  %191 = vmatprep.subr.bf16.mxu0 0
  %192 = vmatpush1.bf16.msra.mxu0 %v164
  %193 = vmatprep.subr.bf16.mxu0 0
  %194 = vmatpush1.bf16.msra.mxu0 %v163
  %195 = vmatprep.subr.bf16.mxu0 0
  %196 = vmatpush2.bf16.msra.mxu0 0
  %197 = vmatprep.subr.bf16.mxu0 0
  %198 = vmatpush2.bf16.msra.mxu0 0
  %199 = vmatprep.subr.bf16.mxu0 0
  %200 = vmatpush2.bf16.msra.mxu0 0
  %201 = vmatprep.subr.bf16.mxu0 0
  %202 = vmatpush2.bf16.msra.mxu0 0
  %203 = vmatprep.subr.bf16.mxu0 0
  %204 = vmatpush2.bf16.msra.mxu0 0
  %205 = vmatprep.subr.bf16.mxu0 0
  %206 = vmatpush2.bf16.msra.mxu0 0
  %207 = vmatprep.subr.bf16.mxu0 0
  %208 = vmatpush2.bf16.msra.mxu0 0
  %209 = vmatprep.subr.bf16.mxu0 0
  %210 = vmatpush2.bf16.msra.mxu0 0
  %211 = vmatprep.mubr.bf16.mxu0 0
  %212 = vmatmul.mubr.bf16.gmra.mxu0 %v115
  %v213 = vpop.f32.mrf.mxu0
  %v214 = vadd.f32 0.0, %v213
  %v215 = vpop.f32.mrf.mxu0
  %v216 = vpop.f32.mrf.mxu0
  %v217 = vadd.f32 0.0, %v216
  %v218 = vpop.f32.mrf.mxu0
  %219 = vmatprep.mubr.bf16.mxu0 0
  %220 = vmatmul.mubr.bf16.gmra.mxu0 %v116
  %v221 = vpop.f32.mrf.mxu0
  %v222 = vadd.f32 0.0, %v221
  %v223 = vpop.f32.mrf.mxu0
  %v224 = vpop.f32.mrf.mxu0
  %v225 = vadd.f32 0.0, %v224
  %v226 = vpop.f32.mrf.mxu0
  %227 = vmatprep.mubr.bf16.mxu0 0
  %228 = vmatmul.mubr.bf16.gmra.mxu0 %v117
  %v229 = vpop.f32.mrf.mxu0
  %v230 = vadd.f32 0.0, %v229
  %v231 = vpop.f32.mrf.mxu0
  %v232 = vpop.f32.mrf.mxu0
  %v233 = vadd.f32 0.0, %v232
  %v234 = vpop.f32.mrf.mxu0
  %235 = vmatprep.mubr.bf16.mxu0 0
  %236 = vmatmul.mubr.bf16.gmra.mxu0 %v118
  %v237 = vpop.f32.mrf.mxu0
  %v238 = vadd.f32 0.0, %v237
  %v239 = vpop.f32.mrf.mxu0
  %v240 = vpop.f32.mrf.mxu0
  %v241 = vadd.f32 0.0, %v240
  %v242 = vpop.f32.mrf.mxu0
  %243 = vmatprep.mubr.bf16.mxu0 0
  %244 = vmatmul.mubr.bf16.gmra.mxu0 %v119
  %v245 = vpop.f32.mrf.mxu0
  %v246 = vadd.f32 0.0, %v245
  %v247 = vpop.f32.mrf.mxu0
  %v248 = vpop.f32.mrf.mxu0
  %v249 = vadd.f32 0.0, %v248
  %v250 = vpop.f32.mrf.mxu0
  %251 = vmatprep.mubr.bf16.mxu0 0
  %252 = vmatmul.mubr.bf16.gmra.mxu0 %v120
  %v253 = vpop.f32.mrf.mxu0
  %v254 = vadd.f32 0.0, %v253
  %v255 = vpop.f32.mrf.mxu0
  %v256 = vpop.f32.mrf.mxu0
  %v257 = vadd.f32 0.0, %v256
  %v258 = vpop.f32.mrf.mxu0
  %259 = vmatprep.mubr.bf16.mxu0 0
  %260 = vmatmul.mubr.bf16.gmra.mxu0 %v121
  %v261 = vpop.f32.mrf.mxu0
  %v262 = vadd.f32 0.0, %v261
  %v263 = vpop.f32.mrf.mxu0
  %v264 = vpop.f32.mrf.mxu0
  %v265 = vadd.f32 0.0, %v264
  %v266 = vpop.f32.mrf.mxu0
  %267 = vmatprep.mubr.bf16.mxu0 0
  %268 = vmatmul.mubr.bf16.gmra.mxu0 %v122
  %v269 = vpop.f32.mrf.mxu0
  %v270 = vadd.f32 0.0, %v269
  %v271 = vpop.f32.mrf.mxu0
  %v272 = vpop.f32.mrf.mxu0
  %v273 = vadd.f32 0.0, %v272
  %v274 = vpop.f32.mrf.mxu0
  %275 = vdwg.mxu0
  %v276 = vadd.f32 %v35, %v214
  %v277 = vadd.f32 %v36, %v217
  %v278 = vadd.f32 %v37, %v222
  %v279 = vadd.f32 %v38, %v225
  %v280 = vadd.f32 %v39, %v230
  %v281 = vadd.f32 %v40, %v233
  %v282 = vadd.f32 %v41, %v238
  %v283 = vadd.f32 %v42, %v241
  %v284 = vadd.f32 %v43, %v246
  %v285 = vadd.f32 %v44, %v249
  %v286 = vadd.f32 %v45, %v254
  %v287 = vadd.f32 %v46, %v257
  %v288 = vadd.f32 %v47, %v262
  %v289 = vadd.f32 %v48, %v265
  %v290 = vadd.f32 %v49, %v270
  %v291 = vadd.f32 %v50, %v273
  %292 = vst [vmem:[#allocation2] sm:$0xff] %v276
  %293 = vst [vmem:[#allocation2 + $0x8] sm:$0xff] %v277
  %294 = vst [vmem:[#allocation2 + $0x10] sm:$0xff] %v278
  %295 = vst [vmem:[#allocation2 + $0x18] sm:$0xff] %v279
  %296 = vst [vmem:[#allocation2 + $0x20] sm:$0xff] %v280
  %297 = vst [vmem:[#allocation2 + $0x28] sm:$0xff] %v281
  %298 = vst [vmem:[#allocation2 + $0x30] sm:$0xff] %v282
  %299 = vst [vmem:[#allocation2 + $0x38] sm:$0xff] %v283
  %300 = vst [vmem:[#allocation2 + $0x40] sm:$0xff] %v284
  %301 = vst [vmem:[#allocation2 + $0x48] sm:$0xff] %v285
  %302 = vst [vmem:[#allocation2 + $0x50] sm:$0xff] %v286
  %303 = vst [vmem:[#allocation2 + $0x58] sm:$0xff] %v287
  %304 = vst [vmem:[#allocation2 + $0x60] sm:$0xff] %v288
  %305 = vst [vmem:[#allocation2 + $0x68] sm:$0xff] %v289
  %306 = vst [vmem:[#allocation2 + $0x70] sm:$0xff] %v290
  %307 = vst [vmem:[#allocation2 + $0x78] sm:$0xff] %v291
  // Predicated region
  $region18: #{res_basic_block.4} parent=0 // pred_check
    %p308 = pneg %p15
  $region19: #{res_basic_block.4} parent=0 // pred_check_branch
    %310 = sbr.rel (%p308) target = $region21
  $region20: #{res_basic_block.4} parent=0 // pred_region
    %v311 = vld [vmem:[#allocation2] sm:$0xff]
    %v312 = vld [vmem:[#allocation2 + $0x8] sm:$0xff]
    %v313 = vld [vmem:[#allocation2 + $0x10] sm:$0xff]
    %v314 = vld [vmem:[#allocation2 + $0x18] sm:$0xff]
    %v315 = vld [vmem:[#allocation2 + $0x20] sm:$0xff]
    %v316 = vld [vmem:[#allocation2 + $0x28] sm:$0xff]
    %v317 = vld [vmem:[#allocation2 + $0x30] sm:$0xff]
    %v318 = vld [vmem:[#allocation2 + $0x38] sm:$0xff]
    %v319 = vld [vmem:[#allocation2 + $0x40] sm:$0xff]
    %v320 = vld [vmem:[#allocation2 + $0x48] sm:$0xff]
    %v321 = vld [vmem:[#allocation2 + $0x50] sm:$0xff]
    %v322 = vld [vmem:[#allocation2 + $0x58] sm:$0xff]
    %v323 = vld [vmem:[#allocation2 + $0x60] sm:$0xff]
    %v324 = vld [vmem:[#allocation2 + $0x68] sm:$0xff]
    %v325 = vld [vmem:[#allocation2 + $0x70] sm:$0xff]
    %v326 = vld [vmem:[#allocation2 + $0x78] sm:$0xff]
    %v327 = vld [vmem:[%s2] sm:$0x1]
    %v328 = vlaneseq
    %v329 = vshrl.u32 %v328, 7
    %v330 = vsub.s32 0, %v329
    %v331 = vrot.slane %v327, %v330
    %v332 = vmul.f32 %v311, %v331
    %v333 = vmul.f32 %v312, %v331
    %v334 = vmul.f32 %v313, %v331
    %v335 = vmul.f32 %v314, %v331
    %v336 = vmul.f32 %v315, %v331
    %v337 = vmul.f32 %v316, %v331
    %v338 = vmul.f32 %v317, %v331
    %v339 = vmul.f32 %v318, %v331
    %v340 = vmul.f32 %v319, %v331
    %v341 = vmul.f32 %v320, %v331
    %v342 = vmul.f32 %v321, %v331
    %v343 = vmul.f32 %v322, %v331
    %v344 = vmul.f32 %v323, %v331
    %v345 = vmul.f32 %v324, %v331
    %v346 = vmul.f32 %v325, %v331
    %v347 = vmul.f32 %v326, %v331
    %v348 = vld [vmem:[%s2 + $0x1] sm:$0x1]
    %v349 = vlaneseq
    %v350 = vshrl.u32 %v349, 7
    %v351 = vsub.s32 0, %v350
    %v352 = vrot.slane %v348, %v351
    %v353 = vadd.f32 %v332, %v352
    %v354 = vadd.f32 %v333, %v352
    %v355 = vadd.f32 %v334, %v352
    %v356 = vadd.f32 %v335, %v352
    %v357 = vadd.f32 %v336, %v352
    %v358 = vadd.f32 %v337, %v352
    %v359 = vadd.f32 %v338, %v352
    %v360 = vadd.f32 %v339, %v352
    %v361 = vadd.f32 %v340, %v352
    %v362 = vadd.f32 %v341, %v352
    %v363 = vadd.f32 %v342, %v352
    %v364 = vadd.f32 %v343, %v352
    %v365 = vadd.f32 %v344, %v352
    %v366 = vadd.f32 %v345, %v352
    %v367 = vadd.f32 %v346, %v352
    %v368 = vadd.f32 %v347, %v352
    %v369 = vpack.c.bf16 %v354, %v353
    %v370 = vpack.c.bf16 %v356, %v355
    %v371 = vpack.c.bf16 %v358, %v357
    %v372 = vpack.c.bf16 %v360, %v359
    %v373 = vpack.c.bf16 %v362, %v361
    %v374 = vpack.c.bf16 %v364, %v363
    %v375 = vpack.c.bf16 %v366, %v365
    %v376 = vpack.c.bf16 %v368, %v367
    %v385 = vunpack.c.l.b16 %v369
    %v386 = vunpack.c.h.b16 %v369
    %v387 = vunpack.c.l.b16 %v370
    %v388 = vunpack.c.h.b16 %v370
    %v389 = vunpack.c.l.b16 %v371
    %v390 = vunpack.c.h.b16 %v371
    %v391 = vunpack.c.l.b16 %v372
    %v392 = vunpack.c.h.b16 %v372
    %v393 = vunpack.c.l.b16 %v373
    %v394 = vunpack.c.h.b16 %v373
    %v395 = vunpack.c.l.b16 %v374
    %v396 = vunpack.c.h.b16 %v374
    %v397 = vunpack.c.l.b16 %v375
    %v398 = vunpack.c.h.b16 %v375
    %v399 = vunpack.c.l.b16 %v376
    %v400 = vunpack.c.h.b16 %v376
    %v401 = vpack.c.b16 %v385, %v385
    %v402 = vpack.c.b16 %v386, %v386
    %v403 = vpack.c.b16 %v387, %v387
    %v404 = vpack.c.b16 %v388, %v388
    %v405 = vpack.c.b16 %v389, %v389
    %v406 = vpack.c.b16 %v390, %v390
    %v407 = vpack.c.b16 %v391, %v391
    %v408 = vpack.c.b16 %v392, %v392
    %v409 = vpack.c.b16 %v393, %v393
    %v410 = vpack.c.b16 %v394, %v394
    %v411 = vpack.c.b16 %v395, %v395
    %v412 = vpack.c.b16 %v396, %v396
    %v413 = vpack.c.b16 %v397, %v397
    %v414 = vpack.c.b16 %v398, %v398
    %v415 = vpack.c.b16 %v399, %v399
    %v416 = vpack.c.b16 %v400, %v400
    %433 = vst [vmem:[%s3] sm:$0xf] %v401
    %434 = vst [vmem:[%s3 + $0x4] sm:$0xf] %v402
    %435 = vst [vmem:[%s3 + $0x8] sm:$0xf] %v403
    %436 = vst [vmem:[%s3 + $0xc] sm:$0xf] %v404
    %437 = vst [vmem:[%s3 + $0x10] sm:$0xf] %v405
    %438 = vst [vmem:[%s3 + $0x14] sm:$0xf] %v406
    %439 = vst [vmem:[%s3 + $0x18] sm:$0xf] %v407
    %440 = vst [vmem:[%s3 + $0x1c] sm:$0xf] %v408
    %441 = vst [vmem:[%s3 + $0x20] sm:$0xf] %v409
    %442 = vst [vmem:[%s3 + $0x24] sm:$0xf] %v410
    %443 = vst [vmem:[%s3 + $0x28] sm:$0xf] %v411
    %444 = vst [vmem:[%s3 + $0x2c] sm:$0xf] %v412
    %445 = vst [vmem:[%s3 + $0x30] sm:$0xf] %v413
    %446 = vst [vmem:[%s3 + $0x34] sm:$0xf] %v414
    %447 = vst [vmem:[%s3 + $0x38] sm:$0xf] %v415
    %448 = vst [vmem:[%s3 + $0x3c] sm:$0xf] %v416
  $region21: #{res_basic_block.4} parent=0 // pred_fallthru
    _
  // Predicated region
  $region22: #{res_basic_block.4} parent=0 // pred_check
    _
  $region23: #{res_basic_block.4} parent=0 // pred_check_branch
    %450 = sbr.rel (0) target = $region25
  $region24: #{res_basic_block.4} parent=0 // pred_region
    _
  $region25: #{res_basic_block.4} parent=0 // pred_fallthru
    _
  // Predicated region
  $region26: #{res_basic_block.4} parent=0 // pred_check
    _
  $region27: #{res_basic_block.4} parent=0 // pred_check_branch
    %452 = sbr.rel (0) target = $region29
  $region28: #{res_basic_block.4} parent=0 // pred_region
    _
  $region29: #{res_basic_block.4} parent=0 // pred_fallthru
    _

// kernel: res_basic_block.3
$region0: #{res_basic_block.3}
  #allocation0 [shape = 'u32[]', space=smem, size = 0x4, offset = 0x4, fixed_abs, tag = 'smem constant byte address 0x4 - core index']
  #allocation1 [shape = 'u32[144,128]{1,0:T(1,128)}', space=vmem, size = 0x12000, scoped, tag = 'internal scratch']
  #allocation2 [shape = 'f32[128,128]{1,0:T(8,128)}', space=vmem, size = 0x10000, scoped, tag = 'scratch operand']
  %s0 = inlined_call_operand.vmem [shape: bf16[128,128], index: 0, kind: input, shape index: {}]
  %s1 = inlined_call_operand.vmem [shape: bf16[128,128], index: 1, kind: input, shape index: {}]
  %s2 = inlined_call_operand.vmem [shape: f32[2,128], index: 2, kind: input, shape index: {}]
  %s3 = inlined_call_operand.vmem [shape: bf16[128,128], index: 3, kind: output, shape index: {}]
  %s4 = sld [smem:[#allocation0]]
  $region30: #{res_basic_block.3} parent=0
    _
  %s6 = ssub.s32 1, %s4
  %s7 = scalar_select 0, %s6, %s4
  // Predicated region
  $region2: #{res_basic_block.3} parent=0 // pred_check
    _
  $region3: #{res_basic_block.3} parent=0 // pred_check_branch
    %9 = sbr.rel (0) target = $region5
  $region4: #{res_basic_block.3} parent=0 // pred_region
    _
  $region5: #{res_basic_block.3} parent=0 // pred_fallthru
    _
  // Predicated region
  $region6: #{res_basic_block.3} parent=0 // pred_check
    _
  $region7: #{res_basic_block.3} parent=0 // pred_check_branch
    %11 = sbr.rel (0) target = $region9
  $region8: #{res_basic_block.3} parent=0 // pred_region
    _
  $region9: #{res_basic_block.3} parent=0 // pred_fallthru
    _
  // Predicated region
  $region10: #{res_basic_block.3} parent=0 // pred_check
    _
  $region11: #{res_basic_block.3} parent=0 // pred_check_branch
    %13 = sbr.rel (0) target = $region13
  $region12: #{res_basic_block.3} parent=0 // pred_region
    _
  $region13: #{res_basic_block.3} parent=0 // pred_fallthru
    _
  %p15 = scmp.eq.s32.totalorder 0, 0
  // Predicated region
  $region14: #{res_basic_block.3} parent=0 // pred_check
    %p16 = pneg %p15
  $region15: #{res_basic_block.3} parent=0 // pred_check_branch
    %18 = sbr.rel (%p16) target = $region17
  $region16: #{res_basic_block.3} parent=0 // pred_region
    %19 = vst [vmem:[#allocation2] sm:$0xff] 0.0
    %20 = vst [vmem:[#allocation2 + $0x8] sm:$0xff] 0.0
    %21 = vst [vmem:[#allocation2 + $0x10] sm:$0xff] 0.0
    %22 = vst [vmem:[#allocation2 + $0x18] sm:$0xff] 0.0
    %23 = vst [vmem:[#allocation2 + $0x20] sm:$0xff] 0.0
    %24 = vst [vmem:[#allocation2 + $0x28] sm:$0xff] 0.0
    %25 = vst [vmem:[#allocation2 + $0x30] sm:$0xff] 0.0
    %26 = vst [vmem:[#allocation2 + $0x38] sm:$0xff] 0.0
    %27 = vst [vmem:[#allocation2 + $0x40] sm:$0xff] 0.0
    %28 = vst [vmem:[#allocation2 + $0x48] sm:$0xff] 0.0
    %29 = vst [vmem:[#allocation2 + $0x50] sm:$0xff] 0.0
    %30 = vst [vmem:[#allocation2 + $0x58] sm:$0xff] 0.0
    %31 = vst [vmem:[#allocation2 + $0x60] sm:$0xff] 0.0
    %32 = vst [vmem:[#allocation2 + $0x68] sm:$0xff] 0.0
    %33 = vst [vmem:[#allocation2 + $0x70] sm:$0xff] 0.0
    %34 = vst [vmem:[#allocation2 + $0x78] sm:$0xff] 0.0
  $region17: #{res_basic_block.3} parent=0 // pred_fallthru
    _
  %v35 = vld [vmem:[#allocation2] sm:$0xff]
  %v36 = vld [vmem:[#allocation2 + $0x8] sm:$0xff]
  %v37 = vld [vmem:[#allocation2 + $0x10] sm:$0xff]
  %v38 = vld [vmem:[#allocation2 + $0x18] sm:$0xff]
  %v39 = vld [vmem:[#allocation2 + $0x20] sm:$0xff]
  %v40 = vld [vmem:[#allocation2 + $0x28] sm:$0xff]
  %v41 = vld [vmem:[#allocation2 + $0x30] sm:$0xff]
  %v42 = vld [vmem:[#allocation2 + $0x38] sm:$0xff]
  %v43 = vld [vmem:[#allocation2 + $0x40] sm:$0xff]
  %v44 = vld [vmem:[#allocation2 + $0x48] sm:$0xff]
  %v45 = vld [vmem:[#allocation2 + $0x50] sm:$0xff]
  %v46 = vld [vmem:[#allocation2 + $0x58] sm:$0xff]
  %v47 = vld [vmem:[#allocation2 + $0x60] sm:$0xff]
  %v48 = vld [vmem:[#allocation2 + $0x68] sm:$0xff]
  %v49 = vld [vmem:[#allocation2 + $0x70] sm:$0xff]
  %v50 = vld [vmem:[#allocation2 + $0x78] sm:$0xff]
  %v51 = vld [vmem:[%s0] sm:$0xf]
  %v52 = vld [vmem:[%s0 + $0x4] sm:$0xf]
  %v53 = vld [vmem:[%s0 + $0x8] sm:$0xf]
  %v54 = vld [vmem:[%s0 + $0xc] sm:$0xf]
  %v55 = vld [vmem:[%s0 + $0x10] sm:$0xf]
  %v56 = vld [vmem:[%s0 + $0x14] sm:$0xf]
  %v57 = vld [vmem:[%s0 + $0x18] sm:$0xf]
  %v58 = vld [vmem:[%s0 + $0x1c] sm:$0xf]
  %v59 = vld [vmem:[%s0 + $0x20] sm:$0xf]
  %v60 = vld [vmem:[%s0 + $0x24] sm:$0xf]
  %v61 = vld [vmem:[%s0 + $0x28] sm:$0xf]
  %v62 = vld [vmem:[%s0 + $0x2c] sm:$0xf]
  %v63 = vld [vmem:[%s0 + $0x30] sm:$0xf]
  %v64 = vld [vmem:[%s0 + $0x34] sm:$0xf]
  %v65 = vld [vmem:[%s0 + $0x38] sm:$0xf]
  %v66 = vld [vmem:[%s0 + $0x3c] sm:$0xf]
  %v67 = vld [vmem:[%s1] sm:$0xf]
  %v68 = vld [vmem:[%s1 + $0x4] sm:$0xf]
  %v69 = vld [vmem:[%s1 + $0x8] sm:$0xf]
  %v70 = vld [vmem:[%s1 + $0xc] sm:$0xf]
  %v71 = vld [vmem:[%s1 + $0x10] sm:$0xf]
  %v72 = vld [vmem:[%s1 + $0x14] sm:$0xf]
  %v73 = vld [vmem:[%s1 + $0x18] sm:$0xf]
  %v74 = vld [vmem:[%s1 + $0x1c] sm:$0xf]
  %v75 = vld [vmem:[%s1 + $0x20] sm:$0xf]
  %v76 = vld [vmem:[%s1 + $0x24] sm:$0xf]
  %v77 = vld [vmem:[%s1 + $0x28] sm:$0xf]
  %v78 = vld [vmem:[%s1 + $0x2c] sm:$0xf]
  %v79 = vld [vmem:[%s1 + $0x30] sm:$0xf]
  %v80 = vld [vmem:[%s1 + $0x34] sm:$0xf]
  %v81 = vld [vmem:[%s1 + $0x38] sm:$0xf]
  %v82 = vld [vmem:[%s1 + $0x3c] sm:$0xf]
  %v99 = vunpack.c.l.b16 %v51
  %v100 = vunpack.c.l.b16 %v52
  %v101 = vunpack.c.l.b16 %v53
  %v102 = vunpack.c.l.b16 %v54
  %v103 = vunpack.c.l.b16 %v55
  %v104 = vunpack.c.l.b16 %v56
  %v105 = vunpack.c.l.b16 %v57
  %v106 = vunpack.c.l.b16 %v58
  %v107 = vunpack.c.l.b16 %v59
  %v108 = vunpack.c.l.b16 %v60
  %v109 = vunpack.c.l.b16 %v61
  %v110 = vunpack.c.l.b16 %v62
  %v111 = vunpack.c.l.b16 %v63
  %v112 = vunpack.c.l.b16 %v64
  %v113 = vunpack.c.l.b16 %v65
  %v114 = vunpack.c.l.b16 %v66
  %v115 = vpack.c.b16 %v100, %v99
  %v116 = vpack.c.b16 %v102, %v101
  %v117 = vpack.c.b16 %v104, %v103
  %v118 = vpack.c.b16 %v106, %v105
  %v119 = vpack.c.b16 %v108, %v107
  %v120 = vpack.c.b16 %v110, %v109
  %v121 = vpack.c.b16 %v112, %v111
  %v122 = vpack.c.b16 %v114, %v113
  %v147 = vunpack.c.l.b16 %v67
  %v148 = vunpack.c.l.b16 %v68
  %v149 = vunpack.c.l.b16 %v69
  %v150 = vunpack.c.l.b16 %v70
  %v151 = vunpack.c.l.b16 %v71
  %v152 = vunpack.c.l.b16 %v72
  %v153 = vunpack.c.l.b16 %v73
  %v154 = vunpack.c.l.b16 %v74
  %v155 = vunpack.c.l.b16 %v75
  %v156 = vunpack.c.l.b16 %v76
  %v157 = vunpack.c.l.b16 %v77
  %v158 = vunpack.c.l.b16 %v78
  %v159 = vunpack.c.l.b16 %v79
  %v160 = vunpack.c.l.b16 %v80
  %v161 = vunpack.c.l.b16 %v81
  %v162 = vunpack.c.l.b16 %v82
  %v163 = vpack.c.b16 %v148, %v147
  %v164 = vpack.c.b16 %v150, %v149
  %v165 = vpack.c.b16 %v152, %v151
  %v166 = vpack.c.b16 %v154, %v153
  %v167 = vpack.c.b16 %v156, %v155
  %v168 = vpack.c.b16 %v158, %v157
  %v169 = vpack.c.b16 %v160, %v159
  %v170 = vpack.c.b16 %v162, %v161
  %179 = vmatprep.subr.bf16.mxu0 0
  %180 = vmatpush1.bf16.msra.mxu0 %v170
  %181 = vmatprep.subr.bf16.mxu0 0
  %182 = vmatpush1.bf16.msra.mxu0 %v169
  %183 = vmatprep.subr.bf16.mxu0 0
  %184 = vmatpush1.bf16.msra.mxu0 %v168
  %185 = vmatprep.subr.bf16.mxu0 0
  %186 = vmatpush1.bf16.msra.mxu0 %v167
  %187 = vmatprep.subr.bf16.mxu0 0
  %188 = vmatpush1.bf16.msra.mxu0 %v166
  %189 = vmatprep.subr.bf16.mxu0 0
  %190 = vmatpush1.bf16.msra.mxu0 %v165
  %191 = vmatprep.subr.bf16.mxu0 0
  %192 = vmatpush1.bf16.msra.mxu0 %v164
  %193 = vmatprep.subr.bf16.mxu0 0
  %194 = vmatpush1.bf16.msra.mxu0 %v163
  %195 = vmatprep.subr.bf16.mxu0 0
  %196 = vmatpush2.bf16.msra.mxu0 0
  %197 = vmatprep.subr.bf16.mxu0 0
  %198 = vmatpush2.bf16.msra.mxu0 0
  %199 = vmatprep.subr.bf16.mxu0 0
  %200 = vmatpush2.bf16.msra.mxu0 0
  %201 = vmatprep.subr.bf16.mxu0 0
  %202 = vmatpush2.bf16.msra.mxu0 0
  %203 = vmatprep.subr.bf16.mxu0 0
  %204 = vmatpush2.bf16.msra.mxu0 0
  %205 = vmatprep.subr.bf16.mxu0 0
  %206 = vmatpush2.bf16.msra.mxu0 0
  %207 = vmatprep.subr.bf16.mxu0 0
  %208 = vmatpush2.bf16.msra.mxu0 0
  %209 = vmatprep.subr.bf16.mxu0 0
  %210 = vmatpush2.bf16.msra.mxu0 0
  %211 = vmatprep.mubr.bf16.mxu0 0
  %212 = vmatmul.mubr.bf16.gmra.mxu0 %v115
  %v213 = vpop.f32.mrf.mxu0
  %v214 = vadd.f32 0.0, %v213
  %v215 = vpop.f32.mrf.mxu0
  %v216 = vpop.f32.mrf.mxu0
  %v217 = vadd.f32 0.0, %v216
  %v218 = vpop.f32.mrf.mxu0
  %219 = vmatprep.mubr.bf16.mxu0 0
  %220 = vmatmul.mubr.bf16.gmra.mxu0 %v116
  %v221 = vpop.f32.mrf.mxu0
  %v222 = vadd.f32 0.0, %v221
  %v223 = vpop.f32.mrf.mxu0
  %v224 = vpop.f32.mrf.mxu0
  %v225 = vadd.f32 0.0, %v224
  %v226 = vpop.f32.mrf.mxu0
  %227 = vmatprep.mubr.bf16.mxu0 0
  %228 = vmatmul.mubr.bf16.gmra.mxu0 %v117
  %v229 = vpop.f32.mrf.mxu0
  %v230 = vadd.f32 0.0, %v229
  %v231 = vpop.f32.mrf.mxu0
  %v232 = vpop.f32.mrf.mxu0
  %v233 = vadd.f32 0.0, %v232
  %v234 = vpop.f32.mrf.mxu0
  %235 = vmatprep.mubr.bf16.mxu0 0
  %236 = vmatmul.mubr.bf16.gmra.mxu0 %v118
  %v237 = vpop.f32.mrf.mxu0
  %v238 = vadd.f32 0.0, %v237
  %v239 = vpop.f32.mrf.mxu0
  %v240 = vpop.f32.mrf.mxu0
  %v241 = vadd.f32 0.0, %v240
  %v242 = vpop.f32.mrf.mxu0
  %243 = vmatprep.mubr.bf16.mxu0 0
  %244 = vmatmul.mubr.bf16.gmra.mxu0 %v119
  %v245 = vpop.f32.mrf.mxu0
  %v246 = vadd.f32 0.0, %v245
  %v247 = vpop.f32.mrf.mxu0
  %v248 = vpop.f32.mrf.mxu0
  %v249 = vadd.f32 0.0, %v248
  %v250 = vpop.f32.mrf.mxu0
  %251 = vmatprep.mubr.bf16.mxu0 0
  %252 = vmatmul.mubr.bf16.gmra.mxu0 %v120
  %v253 = vpop.f32.mrf.mxu0
  %v254 = vadd.f32 0.0, %v253
  %v255 = vpop.f32.mrf.mxu0
  %v256 = vpop.f32.mrf.mxu0
  %v257 = vadd.f32 0.0, %v256
  %v258 = vpop.f32.mrf.mxu0
  %259 = vmatprep.mubr.bf16.mxu0 0
  %260 = vmatmul.mubr.bf16.gmra.mxu0 %v121
  %v261 = vpop.f32.mrf.mxu0
  %v262 = vadd.f32 0.0, %v261
  %v263 = vpop.f32.mrf.mxu0
  %v264 = vpop.f32.mrf.mxu0
  %v265 = vadd.f32 0.0, %v264
  %v266 = vpop.f32.mrf.mxu0
  %267 = vmatprep.mubr.bf16.mxu0 0
  %268 = vmatmul.mubr.bf16.gmra.mxu0 %v122
  %v269 = vpop.f32.mrf.mxu0
  %v270 = vadd.f32 0.0, %v269
  %v271 = vpop.f32.mrf.mxu0
  %v272 = vpop.f32.mrf.mxu0
  %v273 = vadd.f32 0.0, %v272
  %v274 = vpop.f32.mrf.mxu0
  %275 = vdwg.mxu0
  %v276 = vadd.f32 %v35, %v214
  %v277 = vadd.f32 %v36, %v217
  %v278 = vadd.f32 %v37, %v222
  %v279 = vadd.f32 %v38, %v225
  %v280 = vadd.f32 %v39, %v230
  %v281 = vadd.f32 %v40, %v233
  %v282 = vadd.f32 %v41, %v238
  %v283 = vadd.f32 %v42, %v241
  %v284 = vadd.f32 %v43, %v246
  %v285 = vadd.f32 %v44, %v249
  %v286 = vadd.f32 %v45, %v254
  %v287 = vadd.f32 %v46, %v257
  %v288 = vadd.f32 %v47, %v262
  %v289 = vadd.f32 %v48, %v265
  %v290 = vadd.f32 %v49, %v270
  %v291 = vadd.f32 %v50, %v273
  %292 = vst [vmem:[#allocation2] sm:$0xff] %v276
  %293 = vst [vmem:[#allocation2 + $0x8] sm:$0xff] %v277
  %294 = vst [vmem:[#allocation2 + $0x10] sm:$0xff] %v278
  %295 = vst [vmem:[#allocation2 + $0x18] sm:$0xff] %v279
  %296 = vst [vmem:[#allocation2 + $0x20] sm:$0xff] %v280
  %297 = vst [vmem:[#allocation2 + $0x28] sm:$0xff] %v281
  %298 = vst [vmem:[#allocation2 + $0x30] sm:$0xff] %v282
  %299 = vst [vmem:[#allocation2 + $0x38] sm:$0xff] %v283
  %300 = vst [vmem:[#allocation2 + $0x40] sm:$0xff] %v284
  %301 = vst [vmem:[#allocation2 + $0x48] sm:$0xff] %v285
  %302 = vst [vmem:[#allocation2 + $0x50] sm:$0xff] %v286
  %303 = vst [vmem:[#allocation2 + $0x58] sm:$0xff] %v287
  %304 = vst [vmem:[#allocation2 + $0x60] sm:$0xff] %v288
  %305 = vst [vmem:[#allocation2 + $0x68] sm:$0xff] %v289
  %306 = vst [vmem:[#allocation2 + $0x70] sm:$0xff] %v290
  %307 = vst [vmem:[#allocation2 + $0x78] sm:$0xff] %v291
  // Predicated region
  $region18: #{res_basic_block.3} parent=0 // pred_check
    %p308 = pneg %p15
  $region19: #{res_basic_block.3} parent=0 // pred_check_branch
    %310 = sbr.rel (%p308) target = $region21
  $region20: #{res_basic_block.3} parent=0 // pred_region
    %v311 = vld [vmem:[#allocation2] sm:$0xff]
    %v312 = vld [vmem:[#allocation2 + $0x8] sm:$0xff]
    %v313 = vld [vmem:[#allocation2 + $0x10] sm:$0xff]
    %v314 = vld [vmem:[#allocation2 + $0x18] sm:$0xff]
    %v315 = vld [vmem:[#allocation2 + $0x20] sm:$0xff]
    %v316 = vld [vmem:[#allocation2 + $0x28] sm:$0xff]
    %v317 = vld [vmem:[#allocation2 + $0x30] sm:$0xff]
    %v318 = vld [vmem:[#allocation2 + $0x38] sm:$0xff]
    %v319 = vld [vmem:[#allocation2 + $0x40] sm:$0xff]
    %v320 = vld [vmem:[#allocation2 + $0x48] sm:$0xff]
    %v321 = vld [vmem:[#allocation2 + $0x50] sm:$0xff]
    %v322 = vld [vmem:[#allocation2 + $0x58] sm:$0xff]
    %v323 = vld [vmem:[#allocation2 + $0x60] sm:$0xff]
    %v324 = vld [vmem:[#allocation2 + $0x68] sm:$0xff]
    %v325 = vld [vmem:[#allocation2 + $0x70] sm:$0xff]
    %v326 = vld [vmem:[#allocation2 + $0x78] sm:$0xff]
    %v327 = vld [vmem:[%s2] sm:$0x1]
    %v328 = vlaneseq
    %v329 = vshrl.u32 %v328, 7
    %v330 = vsub.s32 0, %v329
    %v331 = vrot.slane %v327, %v330
    %v332 = vmul.f32 %v311, %v331
    %v333 = vmul.f32 %v312, %v331
    %v334 = vmul.f32 %v313, %v331
    %v335 = vmul.f32 %v314, %v331
    %v336 = vmul.f32 %v315, %v331
    %v337 = vmul.f32 %v316, %v331
    %v338 = vmul.f32 %v317, %v331
    %v339 = vmul.f32 %v318, %v331
    %v340 = vmul.f32 %v319, %v331
    %v341 = vmul.f32 %v320, %v331
    %v342 = vmul.f32 %v321, %v331
    %v343 = vmul.f32 %v322, %v331
    %v344 = vmul.f32 %v323, %v331
    %v345 = vmul.f32 %v324, %v331
    %v346 = vmul.f32 %v325, %v331
    %v347 = vmul.f32 %v326, %v331
    %v348 = vld [vmem:[%s2 + $0x1] sm:$0x1]
    %v349 = vlaneseq
    %v350 = vshrl.u32 %v349, 7
    %v351 = vsub.s32 0, %v350
    %v352 = vrot.slane %v348, %v351
    %v353 = vadd.f32 %v332, %v352
    %v354 = vadd.f32 %v333, %v352
    %v355 = vadd.f32 %v334, %v352
    %v356 = vadd.f32 %v335, %v352
    %v357 = vadd.f32 %v336, %v352
    %v358 = vadd.f32 %v337, %v352
    %v359 = vadd.f32 %v338, %v352
    %v360 = vadd.f32 %v339, %v352
    %v361 = vadd.f32 %v340, %v352
    %v362 = vadd.f32 %v341, %v352
    %v363 = vadd.f32 %v342, %v352
    %v364 = vadd.f32 %v343, %v352
    %v365 = vadd.f32 %v344, %v352
    %v366 = vadd.f32 %v345, %v352
    %v367 = vadd.f32 %v346, %v352
    %v368 = vadd.f32 %v347, %v352
    %v369 = vmax.f32 %v353, 0.0
    %v370 = vmax.f32 %v354, 0.0
    %v371 = vmax.f32 %v355, 0.0
    %v372 = vmax.f32 %v356, 0.0
    %v373 = vmax.f32 %v357, 0.0
    %v374 = vmax.f32 %v358, 0.0
    %v375 = vmax.f32 %v359, 0.0
    %v376 = vmax.f32 %v360, 0.0
    %v377 = vmax.f32 %v361, 0.0
    %v378 = vmax.f32 %v362, 0.0
    %v379 = vmax.f32 %v363, 0.0
    %v380 = vmax.f32 %v364, 0.0
    %v381 = vmax.f32 %v365, 0.0
    %v382 = vmax.f32 %v366, 0.0
    %v383 = vmax.f32 %v367, 0.0
    %v384 = vmax.f32 %v368, 0.0
    %v385 = vpack.c.bf16 %v370, %v369
    %v386 = vpack.c.bf16 %v372, %v371
    %v387 = vpack.c.bf16 %v374, %v373
    %v388 = vpack.c.bf16 %v376, %v375
    %v389 = vpack.c.bf16 %v378, %v377
    %v390 = vpack.c.bf16 %v380, %v379
    %v391 = vpack.c.bf16 %v382, %v381
    %v392 = vpack.c.bf16 %v384, %v383
    %v401 = vunpack.c.l.b16 %v385
    %v402 = vunpack.c.h.b16 %v385
    %v403 = vunpack.c.l.b16 %v386
    %v404 = vunpack.c.h.b16 %v386
    %v405 = vunpack.c.l.b16 %v387
    %v406 = vunpack.c.h.b16 %v387
    %v407 = vunpack.c.l.b16 %v388
    %v408 = vunpack.c.h.b16 %v388
    %v409 = vunpack.c.l.b16 %v389
    %v410 = vunpack.c.h.b16 %v389
    %v411 = vunpack.c.l.b16 %v390
    %v412 = vunpack.c.h.b16 %v390
    %v413 = vunpack.c.l.b16 %v391
    %v414 = vunpack.c.h.b16 %v391
    %v415 = vunpack.c.l.b16 %v392
    %v416 = vunpack.c.h.b16 %v392
    %v417 = vpack.c.b16 %v401, %v401
    %v418 = vpack.c.b16 %v402, %v402
    %v419 = vpack.c.b16 %v403, %v403
    %v420 = vpack.c.b16 %v404, %v404
    %v421 = vpack.c.b16 %v405, %v405
    %v422 = vpack.c.b16 %v406, %v406
    %v423 = vpack.c.b16 %v407, %v407
    %v424 = vpack.c.b16 %v408, %v408
    %v425 = vpack.c.b16 %v409, %v409
    %v426 = vpack.c.b16 %v410, %v410
    %v427 = vpack.c.b16 %v411, %v411
    %v428 = vpack.c.b16 %v412, %v412
    %v429 = vpack.c.b16 %v413, %v413
    %v430 = vpack.c.b16 %v414, %v414
    %v431 = vpack.c.b16 %v415, %v415
    %v432 = vpack.c.b16 %v416, %v416
    %449 = vst [vmem:[%s3] sm:$0xf] %v417
    %450 = vst [vmem:[%s3 + $0x4] sm:$0xf] %v418
    %451 = vst [vmem:[%s3 + $0x8] sm:$0xf] %v419
    %452 = vst [vmem:[%s3 + $0xc] sm:$0xf] %v420
    %453 = vst [vmem:[%s3 + $0x10] sm:$0xf] %v421
    %454 = vst [vmem:[%s3 + $0x14] sm:$0xf] %v422
    %455 = vst [vmem:[%s3 + $0x18] sm:$0xf] %v423
    %456 = vst [vmem:[%s3 + $0x1c] sm:$0xf] %v424
    %457 = vst [vmem:[%s3 + $0x20] sm:$0xf] %v425
    %458 = vst [vmem:[%s3 + $0x24] sm:$0xf] %v426
    %459 = vst [vmem:[%s3 + $0x28] sm:$0xf] %v427
    %460 = vst [vmem:[%s3 + $0x2c] sm:$0xf] %v428
    %461 = vst [vmem:[%s3 + $0x30] sm:$0xf] %v429
    %462 = vst [vmem:[%s3 + $0x34] sm:$0xf] %v430
    %463 = vst [vmem:[%s3 + $0x38] sm:$0xf] %v431
    %464 = vst [vmem:[%s3 + $0x3c] sm:$0xf] %v432
  $region21: #{res_basic_block.3} parent=0 // pred_fallthru
    _
  // Predicated region
  $region22: #{res_basic_block.3} parent=0 // pred_check
    _
  $region23: #{res_basic_block.3} parent=0 // pred_check_branch
    %466 = sbr.rel (0) target = $region25
  $region24: #{res_basic_block.3} parent=0 // pred_region
    _
  $region25: #{res_basic_block.3} parent=0 // pred_fallthru
    _
  // Predicated region
  $region26: #{res_basic_block.3} parent=0 // pred_check
    _
  $region27: #{res_basic_block.3} parent=0 // pred_check_branch
    %468 = sbr.rel (0) target = $region29
  $region28: #{res_basic_block.3} parent=0 // pred_region
    _
  $region29: #{res_basic_block.3} parent=0 // pred_fallthru
    _

// kernel: res_basic_block.5
$region0: #{res_basic_block.5}
  #allocation0 [shape = 'u32[]', space=smem, size = 0x4, offset = 0x4, fixed_abs, tag = 'smem constant byte address 0x4 - core index']
  #allocation1 [shape = 'u32[144,128]{1,0:T(1,128)}', space=vmem, size = 0x12000, scoped, tag = 'internal scratch']
  #allocation2 [shape = 'f32[128,128]{1,0:T(8,128)}', space=vmem, size = 0x10000, scoped, tag = 'scratch operand']
  %s0 = inlined_call_operand.vmem [shape: bf16[128,128], index: 0, kind: input, shape index: {}]
  %s1 = inlined_call_operand.vmem [shape: bf16[128,128], index: 1, kind: input, shape index: {}]
  %s2 = inlined_call_operand.vmem [shape: f32[2,128], index: 2, kind: input, shape index: {}]
  %s3 = inlined_call_operand.vmem [shape: bf16[128,128], index: 3, kind: input, shape index: {}]
  %s4 = inlined_call_operand.hbm [shape: f32[128,128], index: 4, kind: output, shape index: {}]
  %s5 = sld [smem:[#allocation0]]
  $region34: #{res_basic_block.5} parent=0
    _
  %s7 = ssub.s32 1, %s5
  %s8 = scalar_select 0, %s7, %s5
  $region1: #{res_basic_block.5} parent=0
    #allocation3 [shape = 'u8[65536]{0}', space=vmem, size = 0x10000, scoped, tag = 'output window, operand 0, single buffered']
    #allocation4 [shape = 's32[1]{0}', space=sflag, size = 0x4, scoped, tag = 'scoped memory for res_basic_block.5']
    %9 = vsyncpa [#allocation4], 0
    // Predicated region
    $region2: #{res_basic_block.5} parent=1 // pred_check
      _
    $region3: #{res_basic_block.5} parent=1 // pred_check_branch
      %11 = sbr.rel (0) target = $region5
    $region4: #{res_basic_block.5} parent=1 // pred_region
      _
    $region5: #{res_basic_block.5} parent=1 // pred_fallthru
      _
    // Predicated region
    $region6: #{res_basic_block.5} parent=1 // pred_check
      _
    $region7: #{res_basic_block.5} parent=1 // pred_check_branch
      %13 = sbr.rel (0) target = $region9
    $region8: #{res_basic_block.5} parent=1 // pred_region
      _
    $region9: #{res_basic_block.5} parent=1 // pred_fallthru
      _
    // Predicated region
    $region10: #{res_basic_block.5} parent=1 // pred_check
      _
    $region11: #{res_basic_block.5} parent=1 // pred_check_branch
      %15 = sbr.rel (0) target = $region13
    $region12: #{res_basic_block.5} parent=1 // pred_region
      _
    $region13: #{res_basic_block.5} parent=1 // pred_fallthru
      _
    // Predicated region
    $region14: #{res_basic_block.5} parent=1 // pred_check
      _
    $region15: #{res_basic_block.5} parent=1 // pred_check_branch
      %17 = sbr.rel (0) target = $region17
    $region16: #{res_basic_block.5} parent=1 // pred_region
      _
    $region17: #{res_basic_block.5} parent=1 // pred_fallthru
      _
    %p19 = scmp.eq.s32.totalorder 0, 0
    // Predicated region
    $region18: #{res_basic_block.5} parent=1 // pred_check
      %p20 = pneg %p19
    $region19: #{res_basic_block.5} parent=1 // pred_check_branch
      %22 = sbr.rel (%p20) target = $region21
    $region20: #{res_basic_block.5} parent=1 // pred_region
      %23 = vst [vmem:[#allocation2] sm:$0xff] 0.0
      %24 = vst [vmem:[#allocation2 + $0x8] sm:$0xff] 0.0
      %25 = vst [vmem:[#allocation2 + $0x10] sm:$0xff] 0.0
      %26 = vst [vmem:[#allocation2 + $0x18] sm:$0xff] 0.0
      %27 = vst [vmem:[#allocation2 + $0x20] sm:$0xff] 0.0
      %28 = vst [vmem:[#allocation2 + $0x28] sm:$0xff] 0.0
      %29 = vst [vmem:[#allocation2 + $0x30] sm:$0xff] 0.0
      %30 = vst [vmem:[#allocation2 + $0x38] sm:$0xff] 0.0
      %31 = vst [vmem:[#allocation2 + $0x40] sm:$0xff] 0.0
      %32 = vst [vmem:[#allocation2 + $0x48] sm:$0xff] 0.0
      %33 = vst [vmem:[#allocation2 + $0x50] sm:$0xff] 0.0
      %34 = vst [vmem:[#allocation2 + $0x58] sm:$0xff] 0.0
      %35 = vst [vmem:[#allocation2 + $0x60] sm:$0xff] 0.0
      %36 = vst [vmem:[#allocation2 + $0x68] sm:$0xff] 0.0
      %37 = vst [vmem:[#allocation2 + $0x70] sm:$0xff] 0.0
      %38 = vst [vmem:[#allocation2 + $0x78] sm:$0xff] 0.0
    $region21: #{res_basic_block.5} parent=1 // pred_fallthru
      _
    %v39 = vld [vmem:[#allocation2] sm:$0xff]
    %v40 = vld [vmem:[#allocation2 + $0x8] sm:$0xff]
    %v41 = vld [vmem:[#allocation2 + $0x10] sm:$0xff]
    %v42 = vld [vmem:[#allocation2 + $0x18] sm:$0xff]
    %v43 = vld [vmem:[#allocation2 + $0x20] sm:$0xff]
    %v44 = vld [vmem:[#allocation2 + $0x28] sm:$0xff]
    %v45 = vld [vmem:[#allocation2 + $0x30] sm:$0xff]
    %v46 = vld [vmem:[#allocation2 + $0x38] sm:$0xff]
    %v47 = vld [vmem:[#allocation2 + $0x40] sm:$0xff]
    %v48 = vld [vmem:[#allocation2 + $0x48] sm:$0xff]
    %v49 = vld [vmem:[#allocation2 + $0x50] sm:$0xff]
    %v50 = vld [vmem:[#allocation2 + $0x58] sm:$0xff]
    %v51 = vld [vmem:[#allocation2 + $0x60] sm:$0xff]
    %v52 = vld [vmem:[#allocation2 + $0x68] sm:$0xff]
    %v53 = vld [vmem:[#allocation2 + $0x70] sm:$0xff]
    %v54 = vld [vmem:[#allocation2 + $0x78] sm:$0xff]
    %v55 = vld [vmem:[%s0] sm:$0xf]
    %v56 = vld [vmem:[%s0 + $0x4] sm:$0xf]
    %v57 = vld [vmem:[%s0 + $0x8] sm:$0xf]
    %v58 = vld [vmem:[%s0 + $0xc] sm:$0xf]
    %v59 = vld [vmem:[%s0 + $0x10] sm:$0xf]
    %v60 = vld [vmem:[%s0 + $0x14] sm:$0xf]
    %v61 = vld [vmem:[%s0 + $0x18] sm:$0xf]
    %v62 = vld [vmem:[%s0 + $0x1c] sm:$0xf]
    %v63 = vld [vmem:[%s0 + $0x20] sm:$0xf]
    %v64 = vld [vmem:[%s0 + $0x24] sm:$0xf]
    %v65 = vld [vmem:[%s0 + $0x28] sm:$0xf]
    %v66 = vld [vmem:[%s0 + $0x2c] sm:$0xf]
    %v67 = vld [vmem:[%s0 + $0x30] sm:$0xf]
    %v68 = vld [vmem:[%s0 + $0x34] sm:$0xf]
    %v69 = vld [vmem:[%s0 + $0x38] sm:$0xf]
    %v70 = vld [vmem:[%s0 + $0x3c] sm:$0xf]
    %v71 = vld [vmem:[%s1] sm:$0xf]
    %v72 = vld [vmem:[%s1 + $0x4] sm:$0xf]
    %v73 = vld [vmem:[%s1 + $0x8] sm:$0xf]
    %v74 = vld [vmem:[%s1 + $0xc] sm:$0xf]
    %v75 = vld [vmem:[%s1 + $0x10] sm:$0xf]
    %v76 = vld [vmem:[%s1 + $0x14] sm:$0xf]
    %v77 = vld [vmem:[%s1 + $0x18] sm:$0xf]
    %v78 = vld [vmem:[%s1 + $0x1c] sm:$0xf]
    %v79 = vld [vmem:[%s1 + $0x20] sm:$0xf]
    %v80 = vld [vmem:[%s1 + $0x24] sm:$0xf]
    %v81 = vld [vmem:[%s1 + $0x28] sm:$0xf]
    %v82 = vld [vmem:[%s1 + $0x2c] sm:$0xf]
    %v83 = vld [vmem:[%s1 + $0x30] sm:$0xf]
    %v84 = vld [vmem:[%s1 + $0x34] sm:$0xf]
    %v85 = vld [vmem:[%s1 + $0x38] sm:$0xf]
    %v86 = vld [vmem:[%s1 + $0x3c] sm:$0xf]
    %v103 = vunpack.c.l.b16 %v55
    %v104 = vunpack.c.l.b16 %v56
    %v105 = vunpack.c.l.b16 %v57
    %v106 = vunpack.c.l.b16 %v58
    %v107 = vunpack.c.l.b16 %v59
    %v108 = vunpack.c.l.b16 %v60
    %v109 = vunpack.c.l.b16 %v61
    %v110 = vunpack.c.l.b16 %v62
    %v111 = vunpack.c.l.b16 %v63
    %v112 = vunpack.c.l.b16 %v64
    %v113 = vunpack.c.l.b16 %v65
    %v114 = vunpack.c.l.b16 %v66
    %v115 = vunpack.c.l.b16 %v67
    %v116 = vunpack.c.l.b16 %v68
    %v117 = vunpack.c.l.b16 %v69
    %v118 = vunpack.c.l.b16 %v70
    %v119 = vpack.c.b16 %v104, %v103
    %v120 = vpack.c.b16 %v106, %v105
    %v121 = vpack.c.b16 %v108, %v107
    %v122 = vpack.c.b16 %v110, %v109
    %v123 = vpack.c.b16 %v112, %v111
    %v124 = vpack.c.b16 %v114, %v113
    %v125 = vpack.c.b16 %v116, %v115
    %v126 = vpack.c.b16 %v118, %v117
    %v151 = vunpack.c.l.b16 %v71
    %v152 = vunpack.c.l.b16 %v72
    %v153 = vunpack.c.l.b16 %v73
    %v154 = vunpack.c.l.b16 %v74
    %v155 = vunpack.c.l.b16 %v75
    %v156 = vunpack.c.l.b16 %v76
    %v157 = vunpack.c.l.b16 %v77
    %v158 = vunpack.c.l.b16 %v78
    %v159 = vunpack.c.l.b16 %v79
    %v160 = vunpack.c.l.b16 %v80
    %v161 = vunpack.c.l.b16 %v81
    %v162 = vunpack.c.l.b16 %v82
    %v163 = vunpack.c.l.b16 %v83
    %v164 = vunpack.c.l.b16 %v84
    %v165 = vunpack.c.l.b16 %v85
    %v166 = vunpack.c.l.b16 %v86
    %v167 = vpack.c.b16 %v152, %v151
    %v168 = vpack.c.b16 %v154, %v153
    %v169 = vpack.c.b16 %v156, %v155
    %v170 = vpack.c.b16 %v158, %v157
    %v171 = vpack.c.b16 %v160, %v159
    %v172 = vpack.c.b16 %v162, %v161
    %v173 = vpack.c.b16 %v164, %v163
    %v174 = vpack.c.b16 %v166, %v165
    %183 = vmatprep.subr.bf16.mxu0 0
    %184 = vmatpush1.bf16.msra.mxu0 %v174
    %185 = vmatprep.subr.bf16.mxu0 0
    %186 = vmatpush1.bf16.msra.mxu0 %v173
    %187 = vmatprep.subr.bf16.mxu0 0
    %188 = vmatpush1.bf16.msra.mxu0 %v172
    %189 = vmatprep.subr.bf16.mxu0 0
    %190 = vmatpush1.bf16.msra.mxu0 %v171
    %191 = vmatprep.subr.bf16.mxu0 0
    %192 = vmatpush1.bf16.msra.mxu0 %v170
    %193 = vmatprep.subr.bf16.mxu0 0
    %194 = vmatpush1.bf16.msra.mxu0 %v169
    %195 = vmatprep.subr.bf16.mxu0 0
    %196 = vmatpush1.bf16.msra.mxu0 %v168
    %197 = vmatprep.subr.bf16.mxu0 0
    %198 = vmatpush1.bf16.msra.mxu0 %v167
    %199 = vmatprep.subr.bf16.mxu0 0
    %200 = vmatpush2.bf16.msra.mxu0 0
    %201 = vmatprep.subr.bf16.mxu0 0
    %202 = vmatpush2.bf16.msra.mxu0 0
    %203 = vmatprep.subr.bf16.mxu0 0
    %204 = vmatpush2.bf16.msra.mxu0 0
    %205 = vmatprep.subr.bf16.mxu0 0
    %206 = vmatpush2.bf16.msra.mxu0 0
    %207 = vmatprep.subr.bf16.mxu0 0
    %208 = vmatpush2.bf16.msra.mxu0 0
    %209 = vmatprep.subr.bf16.mxu0 0
    %210 = vmatpush2.bf16.msra.mxu0 0
    %211 = vmatprep.subr.bf16.mxu0 0
    %212 = vmatpush2.bf16.msra.mxu0 0
    %213 = vmatprep.subr.bf16.mxu0 0
    %214 = vmatpush2.bf16.msra.mxu0 0
    %215 = vmatprep.mubr.bf16.mxu0 0
    %216 = vmatmul.mubr.bf16.gmra.mxu0 %v119
    %v217 = vpop.f32.mrf.mxu0
    %v218 = vadd.f32 0.0, %v217
    %v219 = vpop.f32.mrf.mxu0
    %v220 = vpop.f32.mrf.mxu0
    %v221 = vadd.f32 0.0, %v220
    %v222 = vpop.f32.mrf.mxu0
    %223 = vmatprep.mubr.bf16.mxu0 0
    %224 = vmatmul.mubr.bf16.gmra.mxu0 %v120
    %v225 = vpop.f32.mrf.mxu0
    %v226 = vadd.f32 0.0, %v225
    %v227 = vpop.f32.mrf.mxu0
    %v228 = vpop.f32.mrf.mxu0
    %v229 = vadd.f32 0.0, %v228
    %v230 = vpop.f32.mrf.mxu0
    %231 = vmatprep.mubr.bf16.mxu0 0
    %232 = vmatmul.mubr.bf16.gmra.mxu0 %v121
    %v233 = vpop.f32.mrf.mxu0
    %v234 = vadd.f32 0.0, %v233
    %v235 = vpop.f32.mrf.mxu0
    %v236 = vpop.f32.mrf.mxu0
    %v237 = vadd.f32 0.0, %v236
    %v238 = vpop.f32.mrf.mxu0
    %239 = vmatprep.mubr.bf16.mxu0 0
    %240 = vmatmul.mubr.bf16.gmra.mxu0 %v122
    %v241 = vpop.f32.mrf.mxu0
    %v242 = vadd.f32 0.0, %v241
    %v243 = vpop.f32.mrf.mxu0
    %v244 = vpop.f32.mrf.mxu0
    %v245 = vadd.f32 0.0, %v244
    %v246 = vpop.f32.mrf.mxu0
    %247 = vmatprep.mubr.bf16.mxu0 0
    %248 = vmatmul.mubr.bf16.gmra.mxu0 %v123
    %v249 = vpop.f32.mrf.mxu0
    %v250 = vadd.f32 0.0, %v249
    %v251 = vpop.f32.mrf.mxu0
    %v252 = vpop.f32.mrf.mxu0
    %v253 = vadd.f32 0.0, %v252
    %v254 = vpop.f32.mrf.mxu0
    %255 = vmatprep.mubr.bf16.mxu0 0
    %256 = vmatmul.mubr.bf16.gmra.mxu0 %v124
    %v257 = vpop.f32.mrf.mxu0
    %v258 = vadd.f32 0.0, %v257
    %v259 = vpop.f32.mrf.mxu0
    %v260 = vpop.f32.mrf.mxu0
    %v261 = vadd.f32 0.0, %v260
    %v262 = vpop.f32.mrf.mxu0
    %263 = vmatprep.mubr.bf16.mxu0 0
    %264 = vmatmul.mubr.bf16.gmra.mxu0 %v125
    %v265 = vpop.f32.mrf.mxu0
    %v266 = vadd.f32 0.0, %v265
    %v267 = vpop.f32.mrf.mxu0
    %v268 = vpop.f32.mrf.mxu0
    %v269 = vadd.f32 0.0, %v268
    %v270 = vpop.f32.mrf.mxu0
    %271 = vmatprep.mubr.bf16.mxu0 0
    %272 = vmatmul.mubr.bf16.gmra.mxu0 %v126
    %v273 = vpop.f32.mrf.mxu0
    %v274 = vadd.f32 0.0, %v273
    %v275 = vpop.f32.mrf.mxu0
    %v276 = vpop.f32.mrf.mxu0
    %v277 = vadd.f32 0.0, %v276
    %v278 = vpop.f32.mrf.mxu0
    %279 = vdwg.mxu0
    %v280 = vadd.f32 %v39, %v218
    %v281 = vadd.f32 %v40, %v221
    %v282 = vadd.f32 %v41, %v226
    %v283 = vadd.f32 %v42, %v229
    %v284 = vadd.f32 %v43, %v234
    %v285 = vadd.f32 %v44, %v237
    %v286 = vadd.f32 %v45, %v242
    %v287 = vadd.f32 %v46, %v245
    %v288 = vadd.f32 %v47, %v250
    %v289 = vadd.f32 %v48, %v253
    %v290 = vadd.f32 %v49, %v258
    %v291 = vadd.f32 %v50, %v261
    %v292 = vadd.f32 %v51, %v266
    %v293 = vadd.f32 %v52, %v269
    %v294 = vadd.f32 %v53, %v274
    %v295 = vadd.f32 %v54, %v277
    %296 = vst [vmem:[#allocation2] sm:$0xff] %v280
    %297 = vst [vmem:[#allocation2 + $0x8] sm:$0xff] %v281
    %298 = vst [vmem:[#allocation2 + $0x10] sm:$0xff] %v282
    %299 = vst [vmem:[#allocation2 + $0x18] sm:$0xff] %v283
    %300 = vst [vmem:[#allocation2 + $0x20] sm:$0xff] %v284
    %301 = vst [vmem:[#allocation2 + $0x28] sm:$0xff] %v285
    %302 = vst [vmem:[#allocation2 + $0x30] sm:$0xff] %v286
    %303 = vst [vmem:[#allocation2 + $0x38] sm:$0xff] %v287
    %304 = vst [vmem:[#allocation2 + $0x40] sm:$0xff] %v288
    %305 = vst [vmem:[#allocation2 + $0x48] sm:$0xff] %v289
    %306 = vst [vmem:[#allocation2 + $0x50] sm:$0xff] %v290
    %307 = vst [vmem:[#allocation2 + $0x58] sm:$0xff] %v291
    %308 = vst [vmem:[#allocation2 + $0x60] sm:$0xff] %v292
    %309 = vst [vmem:[#allocation2 + $0x68] sm:$0xff] %v293
    %310 = vst [vmem:[#allocation2 + $0x70] sm:$0xff] %v294
    %311 = vst [vmem:[#allocation2 + $0x78] sm:$0xff] %v295
    // Predicated region
    $region22: #{res_basic_block.5} parent=1 // pred_check
      %p312 = pneg %p19
    $region23: #{res_basic_block.5} parent=1 // pred_check_branch
      %314 = sbr.rel (%p312) target = $region25
    $region24: #{res_basic_block.5} parent=1 // pred_region
      %v315 = vld [vmem:[#allocation2] sm:$0xff]
      %v316 = vld [vmem:[#allocation2 + $0x8] sm:$0xff]
      %v317 = vld [vmem:[#allocation2 + $0x10] sm:$0xff]
      %v318 = vld [vmem:[#allocation2 + $0x18] sm:$0xff]
      %v319 = vld [vmem:[#allocation2 + $0x20] sm:$0xff]
      %v320 = vld [vmem:[#allocation2 + $0x28] sm:$0xff]
      %v321 = vld [vmem:[#allocation2 + $0x30] sm:$0xff]
      %v322 = vld [vmem:[#allocation2 + $0x38] sm:$0xff]
      %v323 = vld [vmem:[#allocation2 + $0x40] sm:$0xff]
      %v324 = vld [vmem:[#allocation2 + $0x48] sm:$0xff]
      %v325 = vld [vmem:[#allocation2 + $0x50] sm:$0xff]
      %v326 = vld [vmem:[#allocation2 + $0x58] sm:$0xff]
      %v327 = vld [vmem:[#allocation2 + $0x60] sm:$0xff]
      %v328 = vld [vmem:[#allocation2 + $0x68] sm:$0xff]
      %v329 = vld [vmem:[#allocation2 + $0x70] sm:$0xff]
      %v330 = vld [vmem:[#allocation2 + $0x78] sm:$0xff]
      %v331 = vld [vmem:[%s2] sm:$0x1]
      %v332 = vlaneseq
      %v333 = vshrl.u32 %v332, 7
      %v334 = vsub.s32 0, %v333
      %v335 = vrot.slane %v331, %v334
      %v336 = vmul.f32 %v315, %v335
      %v337 = vmul.f32 %v316, %v335
      %v338 = vmul.f32 %v317, %v335
      %v339 = vmul.f32 %v318, %v335
      %v340 = vmul.f32 %v319, %v335
      %v341 = vmul.f32 %v320, %v335
      %v342 = vmul.f32 %v321, %v335
      %v343 = vmul.f32 %v322, %v335
      %v344 = vmul.f32 %v323, %v335
      %v345 = vmul.f32 %v324, %v335
      %v346 = vmul.f32 %v325, %v335
      %v347 = vmul.f32 %v326, %v335
      %v348 = vmul.f32 %v327, %v335
      %v349 = vmul.f32 %v328, %v335
      %v350 = vmul.f32 %v329, %v335
      %v351 = vmul.f32 %v330, %v335
      %v352 = vld [vmem:[%s2 + $0x1] sm:$0x1]
      %v353 = vlaneseq
      %v354 = vshrl.u32 %v353, 7
      %v355 = vsub.s32 0, %v354
      %v356 = vrot.slane %v352, %v355
      %v357 = vadd.f32 %v336, %v356
      %v358 = vadd.f32 %v337, %v356
      %v359 = vadd.f32 %v338, %v356
      %v360 = vadd.f32 %v339, %v356
      %v361 = vadd.f32 %v340, %v356
      %v362 = vadd.f32 %v341, %v356
      %v363 = vadd.f32 %v342, %v356
      %v364 = vadd.f32 %v343, %v356
      %v365 = vadd.f32 %v344, %v356
      %v366 = vadd.f32 %v345, %v356
      %v367 = vadd.f32 %v346, %v356
      %v368 = vadd.f32 %v347, %v356
      %v369 = vadd.f32 %v348, %v356
      %v370 = vadd.f32 %v349, %v356
      %v371 = vadd.f32 %v350, %v356
      %v372 = vadd.f32 %v351, %v356
      %v373 = vld [vmem:[%s3] sm:$0xf]
      %v374 = vld [vmem:[%s3 + $0x4] sm:$0xf]
      %v375 = vld [vmem:[%s3 + $0x8] sm:$0xf]
      %v376 = vld [vmem:[%s3 + $0xc] sm:$0xf]
      %v377 = vld [vmem:[%s3 + $0x10] sm:$0xf]
      %v378 = vld [vmem:[%s3 + $0x14] sm:$0xf]
      %v379 = vld [vmem:[%s3 + $0x18] sm:$0xf]
      %v380 = vld [vmem:[%s3 + $0x1c] sm:$0xf]
      %v381 = vld [vmem:[%s3 + $0x20] sm:$0xf]
      %v382 = vld [vmem:[%s3 + $0x24] sm:$0xf]
      %v383 = vld [vmem:[%s3 + $0x28] sm:$0xf]
      %v384 = vld [vmem:[%s3 + $0x2c] sm:$0xf]
      %v385 = vld [vmem:[%s3 + $0x30] sm:$0xf]
      %v386 = vld [vmem:[%s3 + $0x34] sm:$0xf]
      %v387 = vld [vmem:[%s3 + $0x38] sm:$0xf]
      %v388 = vld [vmem:[%s3 + $0x3c] sm:$0xf]
      %v389 = vunpack.c.l.bf16 %v373
      %v390 = vunpack.c.l.bf16 %v374
      %v391 = vunpack.c.l.bf16 %v375
      %v392 = vunpack.c.l.bf16 %v376
      %v393 = vunpack.c.l.bf16 %v377
      %v394 = vunpack.c.l.bf16 %v378
      %v395 = vunpack.c.l.bf16 %v379
      %v396 = vunpack.c.l.bf16 %v380
      %v397 = vunpack.c.l.bf16 %v381
      %v398 = vunpack.c.l.bf16 %v382
      %v399 = vunpack.c.l.bf16 %v383
      %v400 = vunpack.c.l.bf16 %v384
      %v401 = vunpack.c.l.bf16 %v385
      %v402 = vunpack.c.l.bf16 %v386
      %v403 = vunpack.c.l.bf16 %v387
      %v404 = vunpack.c.l.bf16 %v388
      %v405 = vadd.f32 %v357, %v389
      %v406 = vadd.f32 %v358, %v390
      %v407 = vadd.f32 %v359, %v391
      %v408 = vadd.f32 %v360, %v392
      %v409 = vadd.f32 %v361, %v393
      %v410 = vadd.f32 %v362, %v394
      %v411 = vadd.f32 %v363, %v395
      %v412 = vadd.f32 %v364, %v396
      %v413 = vadd.f32 %v365, %v397
      %v414 = vadd.f32 %v366, %v398
      %v415 = vadd.f32 %v367, %v399
      %v416 = vadd.f32 %v368, %v400
      %v417 = vadd.f32 %v369, %v401
      %v418 = vadd.f32 %v370, %v402
      %v419 = vadd.f32 %v371, %v403
      %v420 = vadd.f32 %v372, %v404
      %v421 = vmax.f32 %v405, 0.0
      %v422 = vmax.f32 %v406, 0.0
      %v423 = vmax.f32 %v407, 0.0
      %v424 = vmax.f32 %v408, 0.0
      %v425 = vmax.f32 %v409, 0.0
      %v426 = vmax.f32 %v410, 0.0
      %v427 = vmax.f32 %v411, 0.0
      %v428 = vmax.f32 %v412, 0.0
      %v429 = vmax.f32 %v413, 0.0
      %v430 = vmax.f32 %v414, 0.0
      %v431 = vmax.f32 %v415, 0.0
      %v432 = vmax.f32 %v416, 0.0
      %v433 = vmax.f32 %v417, 0.0
      %v434 = vmax.f32 %v418, 0.0
      %v435 = vmax.f32 %v419, 0.0
      %v436 = vmax.f32 %v420, 0.0
      %437 = vst [vmem:[#allocation3] sm:$0xff] %v421
      %438 = vst [vmem:[#allocation3 + $0x8] sm:$0xff] %v422
      %439 = vst [vmem:[#allocation3 + $0x10] sm:$0xff] %v423
      %440 = vst [vmem:[#allocation3 + $0x18] sm:$0xff] %v424
      %441 = vst [vmem:[#allocation3 + $0x20] sm:$0xff] %v425
      %442 = vst [vmem:[#allocation3 + $0x28] sm:$0xff] %v426
      %443 = vst [vmem:[#allocation3 + $0x30] sm:$0xff] %v427
      %444 = vst [vmem:[#allocation3 + $0x38] sm:$0xff] %v428
      %445 = vst [vmem:[#allocation3 + $0x40] sm:$0xff] %v429
      %446 = vst [vmem:[#allocation3 + $0x48] sm:$0xff] %v430
      %447 = vst [vmem:[#allocation3 + $0x50] sm:$0xff] %v431
      %448 = vst [vmem:[#allocation3 + $0x58] sm:$0xff] %v432
      %449 = vst [vmem:[#allocation3 + $0x60] sm:$0xff] %v433
      %450 = vst [vmem:[#allocation3 + $0x68] sm:$0xff] %v434
      %451 = vst [vmem:[#allocation3 + $0x70] sm:$0xff] %v435
      %452 = vst [vmem:[#allocation3 + $0x78] sm:$0xff] %v436
    $region25: #{res_basic_block.5} parent=1 // pred_fallthru
      _
    // Predicated region
    $region26: #{res_basic_block.5} parent=1 // pred_check
      _
    $region27: #{res_basic_block.5} parent=1 // pred_check_branch
      %454 = sbr.rel (0) target = $region29
    $region28: #{res_basic_block.5} parent=1 // pred_region
      %s456 = ssub.s32 2048, 2048
      %457 = vsyncadd [#allocation4], %s456
      %s458 = sshll.u32 [#allocation3], 4
      %s459 = int_to_ptr.vmem [resolvable:$true] %s458
      %464 = dma.vmem_to_hbm [thread:$0]  %s459, 2048, %s4, [#allocation4], 128, 128, 8
    $region29: #{res_basic_block.5} parent=1 // pred_fallthru
      _
    // Predicated region
    $region30: #{res_basic_block.5} parent=1 // pred_check
      _
    $region31: #{res_basic_block.5} parent=1 // pred_check_branch
      %466 = sbr.rel (0) target = $region33
    $region32: #{res_basic_block.5} parent=1 // pred_region
      %467 = dma.done [#allocation4], 2048
    $region33: #{res_basic_block.5} parent=1 // pred_fallthru
      _
    %468 = vsyncpa [#allocation4], 1

</llo_original>
